<compile_context>
chip_gen: v7x
topology: tpu7x:2x2x1
jax: 0.10.0
libtpu: 0.0.40
codegen_flags: <defaults>
</compile_context>

<pallas_src>
import jax
import jax.numpy as jnp
from jax.experimental import pallas as pl
from jax.experimental.pallas import tpu as pltpu

N_FEAT_1 = 512
N_FEAT_2 = 256
OUT_PAD = 128            # final layer padded from 1 -> 128 output lanes
LANE = 128


def _leaky_relu(x, negative_slope=0.2):
    # max(x, a*x) == LeakyReLU_a(x) for 0 < a < 1 (2 VALU ops vs cmp+mul+select).
    return jnp.maximum(x, negative_slope * x)


def _round_up(n, m):
    return (n + m - 1) // m * m


def discriminator_kernel(x_ref, w1_ref, b1_ref, w2_ref, b2_ref, w3_ref, b3_ref,
                         o_ref):
    # x arrives f32 straight from HBM; cast to bf16 here (free VPU filler).
    x = x_ref[...].astype(jnp.bfloat16)

    # hidden1: Linear + LeakyReLU(0.2)   (bf16 MXU, f32 accumulate)
    h1 = jnp.dot(x, w1_ref[...].astype(jnp.bfloat16),
                 preferred_element_type=jnp.float32)
    h1 = _leaky_relu(h1 + b1_ref[...])

    # hidden2: Linear + LeakyReLU(0.2)
    h2 = jnp.dot(h1.astype(jnp.bfloat16), w2_ref[...].astype(jnp.bfloat16),
                 preferred_element_type=jnp.float32)
    h2 = _leaky_relu(h2 + b2_ref[...])

    # hidden3: Linear + Sigmoid.  w3 is zero-padded to 128 output lanes; only
    # column 0 is real.  Sigmoid is computed on that single column (128x less
    # EUP work) and lane-broadcast so the store stays lane-dense/unmasked.
    h3 = jnp.dot(h2.astype(jnp.bfloat16), w3_ref[...].astype(jnp.bfloat16),
                 preferred_element_type=jnp.float32)
    col = jax.nn.sigmoid(h3[:, :1] + b3_ref[0, 0])
    o_ref[...] = jnp.broadcast_to(col.astype(o_ref.dtype), o_ref.shape)


def discriminator_forward(x, params, *, tile_b=1024):
    """x: [B, n_feat_in] float32 -> [B, 1] float32 (sigmoid output)."""
    w1, b1, w2, b2, w3, b3 = params
    B, F = x.shape
    tile_b = max(8, _round_up(tile_b, 8))

    # Adaptive batch tile (multiple of 8).  Mid-size batches are split into at
    # least two grid steps so the "parallel" axis keeps both v7x TCs busy.
    if B > tile_b:
        tb = tile_b
    elif B >= 512:
        tb = _round_up((B + 1) // 2, 8)
    else:
        tb = _round_up(max(B, 1), 8)
    B_pad = _round_up(B, tb)
    nb = B_pad // tb

    # Only pad the batch when B isn't tile-aligned (extra rows sliced off at
    # the end).  No feature padding, no wrapper-side dtype cast of x/weights.
    if B_pad != B:
        x = jnp.pad(x, ((0, B_pad - B), (0, 0)))

    # Tiny wrapper-side fixups: pad w3 1 -> 128 output lanes (lane-dense,
    # unmasked stores) and route the scalar final bias through SMEM.
    w3p = jnp.pad(w3, ((0, 0), (0, OUT_PAD - w3.shape[1]))).astype(jnp.float32)
    b3s = jnp.reshape(b3, (1, 1)).astype(jnp.float32)
    b1f = jnp.reshape(b1, (1, N_FEAT_1)).astype(jnp.float32)
    b2f = jnp.reshape(b2, (1, N_FEAT_2)).astype(jnp.float32)
    w1f = w1.astype(jnp.float32)
    w2f = w2.astype(jnp.float32)

    def resident(shape):
        # Whole-array block, same block index every grid step -> VMEM-resident,
        # fetched from HBM once per call.
        return pl.BlockSpec(shape, lambda i: (0,) * len(shape))

    flops = 2 * B_pad * (F * N_FEAT_1 + N_FEAT_1 * N_FEAT_2
                         + N_FEAT_2 * OUT_PAD)
    bytes_accessed = (B_pad * F * 4                                   # x (f32)
                      + (F * N_FEAT_1 + N_FEAT_1 * N_FEAT_2
                         + N_FEAT_2 * OUT_PAD) * 4                    # weights
                      + (N_FEAT_1 + N_FEAT_2 + 1) * 4                 # biases
                      + B_pad * OUT_PAD * 2)                          # out (bf16)

    out = pl.pallas_call(
        discriminator_kernel,
        out_shape=jax.ShapeDtypeStruct((B_pad, OUT_PAD), jnp.bfloat16),
        grid=(nb,),
        in_specs=[
            pl.BlockSpec((tb, F), lambda i: (i, 0)),            # x: tiled/pipelined
            resident((F, N_FEAT_1)),                            # w1 (VMEM-resident)
            resident((1, N_FEAT_1)),                            # b1
            resident((N_FEAT_1, N_FEAT_2)),                     # w2
            resident((1, N_FEAT_2)),                            # b2
            resident((N_FEAT_2, OUT_PAD)),                      # w3 (padded)
            pl.BlockSpec(memory_space=pltpu.MemorySpace.SMEM),  # b3 scalar
        ],
        out_specs=pl.BlockSpec((tb, OUT_PAD), lambda i: (i, 0)),
        compiler_params=pltpu.CompilerParams(
            dimension_semantics=("parallel",),
            vmem_limit_bytes=32 * 1024 * 1024,
        ),
        cost_estimate=pl.CostEstimate(
            flops=flops,
            transcendentals=B_pad,          # sigmoid on the single real column
            bytes_accessed=bytes_accessed,
        ),
    )(x, w1f, b1f, w2f, b2f, w3p, b3s)

    return out[:B, :1].astype(jnp.float32)


def init_params(key, n_feat_in, n_feat_1=N_FEAT_1, n_feat_2=N_FEAT_2):
    """Deterministic synthetic init (PyTorch-style uniform fan-in scaling)."""
    ks = jax.random.split(key, 6)

    def linear(kw, kb, fan_in, fan_out):
        bound = 1.0 / jnp.sqrt(jnp.float32(fan_in))
        w = jax.random.uniform(kw, (fan_in, fan_out), jnp.float32, -bound, bound)
        b = jax.random.uniform(kb, (1, fan_out), jnp.float32, -bound, bound)
        return w, b

    w1, b1 = linear(ks[0], ks[1], n_feat_in, n_feat_1)
    w2, b2 = linear(ks[2], ks[3], n_feat_1, n_feat_2)
    w3, b3 = linear(ks[4], ks[5], n_feat_2, 1)
    return (w1, b1, w2, b2, w3, b3)


def reference_forward(x, params):
    """Pure-JAX reference mirroring the kernel's precision (bf16 MXU inputs,
    f32 accumulation, bf16 output rounding)."""
    w1, b1, w2, b2, w3, b3 = params
    bf = lambda a: a.astype(jnp.bfloat16)
    h1 = _leaky_relu(jnp.dot(bf(x), bf(w1),
                             preferred_element_type=jnp.float32) + b1)
    h2 = _leaky_relu(jnp.dot(bf(h1), bf(w2),
                             preferred_element_type=jnp.float32) + b2)
    h3 = jnp.dot(bf(h2), bf(w3), preferred_element_type=jnp.float32) + b3
    return jax.nn.sigmoid(h3).astype(jnp.bfloat16).astype(jnp.float32)


if __name__ == "__main__":
    key = jax.random.PRNGKey(0)
    k_x, k_p = jax.random.split(key)

    B = 8              # small demo batch (one 8-row tile, no batch padding)
    n_feat_in = 784    # flattened 28x28 image; feature dim stays un-padded

    x = jax.random.normal(k_x, (B, n_feat_in), dtype=jnp.float32)
    params = init_params(k_p, n_feat_in)

    out = discriminator_forward(x, params)
    out = jax.block_until_ready(out)

    ref = reference_forward(x, params)
    assert out.shape == (B, 1), out.shape
    # bf16 output rounding + possible f32-accumulation reassociation -> loose tol.
    assert jnp.allclose(out, ref, atol=2e-2, rtol=2e-2), "mismatch vs reference"

    print("KERNEL_OK")
</pallas_src>

<mosaic_0001>
module attributes {stable_mosaic.version = 11 : i64} {
  func.func @discriminator_kernel(%arg0: i32, %arg1: memref<8x784xf32, #tpu.memory_space<vmem>>, %arg2: memref<784x512xf32, #tpu.memory_space<vmem>>, %arg3: memref<1x512xf32, #tpu.memory_space<vmem>>, %arg4: memref<512x256xf32, #tpu.memory_space<vmem>>, %arg5: memref<1x256xf32, #tpu.memory_space<vmem>>, %arg6: memref<256x128xf32, #tpu.memory_space<vmem>>, %arg7: memref<1x1xf32, #tpu.memory_space<smem>>, %arg8: memref<8x128xbf16, #tpu.memory_space<vmem>>) attributes {dimension_semantics = [#tpu.dimension_semantics<parallel>], iteration_bounds = array<i64: 1>, scalar_prefetch = 0 : i64, scratch_operands = 0 : i64, tpu.core_type = #tpu.core_type<tc>, window_params = [{transform_indices = @transform_0, window_bounds = array<i64: 8, 784>}, {pipeline_mode = #tpu.pipeline_mode<synchronous>, transform_indices = @transform_1, window_bounds = array<i64: 784, 512>}, {pipeline_mode = #tpu.pipeline_mode<synchronous>, transform_indices = @transform_2, window_bounds = array<i64: 1, 512>}, {pipeline_mode = #tpu.pipeline_mode<synchronous>, transform_indices = @transform_3, window_bounds = array<i64: 512, 256>}, {pipeline_mode = #tpu.pipeline_mode<synchronous>, transform_indices = @transform_4, window_bounds = array<i64: 1, 256>}, {pipeline_mode = #tpu.pipeline_mode<synchronous>, transform_indices = @transform_5, window_bounds = array<i64: 256, 128>}, {transform_indices = @transform_6, window_bounds = array<i64: 1, 1>}, {transform_indices = @transform_7, window_bounds = array<i64: 8, 128>}]} {
    %c0 = arith.constant 0 : index
    %c0_0 = arith.constant 0 : index
    %0 = vector.load %arg1[%c0, %c0_0] : memref<8x784xf32, #tpu.memory_space<vmem>>, vector<8x784xf32>
    %1 = arith.truncf %0 : vector<8x784xf32> to vector<8x784xbf16>
    %c0_1 = arith.constant 0 : index
    %c0_2 = arith.constant 0 : index
    %2 = vector.load %arg2[%c0_1, %c0_2] : memref<784x512xf32, #tpu.memory_space<vmem>>, vector<784x512xf32>
    %3 = arith.truncf %2 : vector<784x512xf32> to vector<784x512xbf16>
    %cst = arith.constant dense<0.000000e+00> : vector<8x512xf32>
    %4 = tpu.matmul %1, %3, %cst {dimension_numbers = #tpu.dot_dimension_numbers<[1], [0], [0], [1], [0, 0, 1, 1], [], []>} : vector<8x784xbf16>, vector<784x512xbf16>, vector<8x512xf32> -> vector<8x512xf32>
    %c0_3 = arith.constant 0 : index
    %c0_4 = arith.constant 0 : index
    %5 = vector.load %arg3[%c0_3, %c0_4] : memref<1x512xf32, #tpu.memory_space<vmem>>, vector<1x512xf32>
    %6 = vector.broadcast %5 : vector<1x512xf32> to vector<8x512xf32>
    %7 = arith.addf %4, %6 : vector<8x512xf32>
    %cst_5 = arith.constant 2.000000e-01 : f32
    %8 = vector.broadcast %cst_5 : f32 to vector<8x512xf32>
    %9 = arith.mulf %8, %7 : vector<8x512xf32>
    %10 = arith.maximumf %7, %9 : vector<8x512xf32>
    %11 = arith.truncf %10 : vector<8x512xf32> to vector<8x512xbf16>
    %c0_6 = arith.constant 0 : index
    %c0_7 = arith.constant 0 : index
    %12 = vector.load %arg4[%c0_6, %c0_7] : memref<512x256xf32, #tpu.memory_space<vmem>>, vector<512x256xf32>
    %13 = arith.truncf %12 : vector<512x256xf32> to vector<512x256xbf16>
    %cst_8 = arith.constant dense<0.000000e+00> : vector<8x256xf32>
    %14 = tpu.matmul %11, %13, %cst_8 {dimension_numbers = #tpu.dot_dimension_numbers<[1], [0], [0], [1], [0, 0, 1, 1], [], []>} : vector<8x512xbf16>, vector<512x256xbf16>, vector<8x256xf32> -> vector<8x256xf32>
    %c0_9 = arith.constant 0 : index
    %c0_10 = arith.constant 0 : index
    %15 = vector.load %arg5[%c0_9, %c0_10] : memref<1x256xf32, #tpu.memory_space<vmem>>, vector<1x256xf32>
    %16 = vector.broadcast %15 : vector<1x256xf32> to vector<8x256xf32>
    %17 = arith.addf %14, %16 : vector<8x256xf32>
    %cst_11 = arith.constant 2.000000e-01 : f32
    %18 = vector.broadcast %cst_11 : f32 to vector<8x256xf32>
    %19 = arith.mulf %18, %17 : vector<8x256xf32>
    %20 = arith.maximumf %17, %19 : vector<8x256xf32>
    %21 = arith.truncf %20 : vector<8x256xf32> to vector<8x256xbf16>
    %c0_12 = arith.constant 0 : index
    %c0_13 = arith.constant 0 : index
    %22 = vector.load %arg6[%c0_12, %c0_13] : memref<256x128xf32, #tpu.memory_space<vmem>>, vector<256x128xf32>
    %23 = arith.truncf %22 : vector<256x128xf32> to vector<256x128xbf16>
    %cst_14 = arith.constant dense<0.000000e+00> : vector<8x128xf32>
    %24 = tpu.matmul %21, %23, %cst_14 {dimension_numbers = #tpu.dot_dimension_numbers<[1], [0], [0], [1], [0, 0, 1, 1], [], []>} : vector<8x256xbf16>, vector<256x128xbf16>, vector<8x128xf32> -> vector<8x128xf32>
    %25 = vector.extract_strided_slice %24 {offsets = [0, 0], sizes = [8, 1], strides = [1, 1]} : vector<8x128xf32> to vector<8x1xf32>
    %c0_15 = arith.constant 0 : index
    %c0_16 = arith.constant 0 : index
    %26 = memref.load %arg7[%c0_15, %c0_16] : memref<1x1xf32, #tpu.memory_space<smem>>
    %27 = vector.broadcast %26 : f32 to vector<8x1xf32>
    %28 = arith.addf %25, %27 : vector<8x1xf32>
    %29 = arith.negf %28 : vector<8x1xf32>
    %30 = math.exp %29 : vector<8x1xf32>
    %cst_17 = arith.constant 1.000000e+00 : f32
    %31 = vector.broadcast %cst_17 : f32 to vector<8x1xf32>
    %32 = arith.addf %31, %30 : vector<8x1xf32>
    %33 = arith.divf %31, %32 : vector<8x1xf32>
    %34 = arith.truncf %33 : vector<8x1xf32> to vector<8x1xbf16>
    %35 = vector.shape_cast %34 : vector<8x1xbf16> to vector<8x1xbf16>
    %36 = vector.broadcast %35 : vector<8x1xbf16> to vector<8x128xbf16>
    %c0_18 = arith.constant 0 : index
    %c0_19 = arith.constant 0 : index
    %37 = vector.load %arg8[%c0_18, %c0_19] : memref<8x128xbf16, #tpu.memory_space<vmem>>, vector<8x128xbf16>
    tpu.vector_store %arg8[%c0_18, %c0_19], %36 {strides = array<i32>} : memref<8x128xbf16, #tpu.memory_space<vmem>>, vector<8x128xbf16>,
    return
  }
  func.func @transform_0(%arg0: i32) -> (i32, i32) {
    %c0_i32 = arith.constant 0 : i32
    %c0_i32_0 = arith.constant 0 : i32
    return %arg0, %c0_i32 : i32, i32
  }
  func.func @transform_1(%arg0: i32) -> (i32, i32) {
    %c0_i32 = arith.constant 0 : i32
    %c0_i32_0 = arith.constant 0 : i32
    %c0_i32_1 = arith.constant 0 : i32
    return %c0_i32, %c0_i32_0 : i32, i32
  }
  func.func @transform_2(%arg0: i32) -> (i32, i32) {
    %c0_i32 = arith.constant 0 : i32
    %c0_i32_0 = arith.constant 0 : i32
    %c0_i32_1 = arith.constant 0 : i32
    return %c0_i32, %c0_i32_0 : i32, i32
  }
  func.func @transform_3(%arg0: i32) -> (i32, i32) {
    %c0_i32 = arith.constant 0 : i32
    %c0_i32_0 = arith.constant 0 : i32
    %c0_i32_1 = arith.constant 0 : i32
    return %c0_i32, %c0_i32_0 : i32, i32
  }
  func.func @transform_4(%arg0: i32) -> (i32, i32) {
    %c0_i32 = arith.constant 0 : i32
    %c0_i32_0 = arith.constant 0 : i32
    %c0_i32_1 = arith.constant 0 : i32
    return %c0_i32, %c0_i32_0 : i32, i32
  }
  func.func @transform_5(%arg0: i32) -> (i32, i32) {
    %c0_i32 = arith.constant 0 : i32
    %c0_i32_0 = arith.constant 0 : i32
    %c0_i32_1 = arith.constant 0 : i32
    return %c0_i32, %c0_i32_0 : i32, i32
  }
  func.func @transform_6(%arg0: i32) -> (i32, i32) {
    %c0_i32 = arith.constant 0 : i32
    %c0_i32_0 = arith.constant 0 : i32
    %c0_i32_1 = arith.constant 0 : i32
    return %c0_i32, %c0_i32_0 : i32, i32
  }
  func.func @transform_7(%arg0: i32) -> (i32, i32) {
    %c0_i32 = arith.constant 0 : i32
    %c0_i32_0 = arith.constant 0 : i32
    return %arg0, %c0_i32 : i32, i32
  }
}

</mosaic_0001>

<llo_original>
// kernel: tpu_custom_call.1
$region0: #{tpu_custom_call.1}
  #allocation0 [shape = 'u32[]', space=smem, size = 0x4, offset = 0x4, fixed_abs, tag = 'smem constant byte address 0x4 - core index']
  #allocation1 [shape = 'u32[144,128]{1,0:T(1,128)}', space=vmem, size = 0x12000, scoped, tag = 'internal scratch']
  #allocation2 [shape = 'f32[1,1]{1,0:T(1,128)S(6)}', space=smem, size = 0x200, scoped, tag = 'scoped memory for tpu_custom_call.1']
  %s0 = inlined_call_operand.hbm [shape: f32[8,784], index: 0, kind: input, shape index: {}]
  %s1 = inlined_call_operand.hbm [shape: f32[784,512], index: 1, kind: input, shape index: {}]
  %s2 = inlined_call_operand.hbm [shape: f32[1,512], index: 2, kind: input, shape index: {}]
  %s3 = inlined_call_operand.hbm [shape: f32[512,256], index: 3, kind: input, shape index: {}]
  %s4 = inlined_call_operand.hbm [shape: f32[1,256], index: 4, kind: input, shape index: {}]
  %s5 = inlined_call_operand.hbm [shape: f32[256,128], index: 5, kind: input, shape index: {}]
  %s6 = inlined_call_operand.<no memory space> [shape: f32[1,1], index: 6, kind: input, shape index: {}]
  %s7 = inlined_call_operand.hbm [shape: bf16[8,128], index: 7, kind: output, shape index: {}]
  %s8 = sld [smem:[#allocation0]]
  $region62: #{tpu_custom_call.1} parent=0
    _
  %s10 = ssub.s32 1, %s8
  %s11 = scalar_select 0, %s10, %s8
  %12 = sst [smem:[#allocation2]] %s6
  $region1: #{tpu_custom_call.1} parent=0
    #allocation3 [shape = 'u8[28672]{0}', space=vmem, size = 0x7000, scoped, tag = 'input window, operand 0, single buffered']
    #allocation4 [shape = 's32[1]{0}', space=sflag, size = 0x4, scoped, tag = 'scoped memory for tpu_custom_call.1']
    #allocation5 [shape = 's32[1]{0}', space=sflag, size = 0x4, scoped, tag = 'scoped memory for tpu_custom_call.1']
    #allocation6 [shape = 'u8[1605632]{0}', space=vmem, size = 0x188000, scoped, tag = 'input window, operand 1, single buffered']
    #allocation7 [shape = 's32[1]{0}', space=sflag, size = 0x4, scoped, tag = 'scoped memory for tpu_custom_call.1']
    #allocation8 [shape = 'u8[2048]{0}', space=vmem, size = 0x800, scoped, tag = 'input window, operand 2, single buffered']
    #allocation9 [shape = 'u8[524288]{0}', space=vmem, size = 0x80000, scoped, tag = 'input window, operand 3, single buffered']
    #allocation10 [shape = 's32[1]{0}', space=sflag, size = 0x4, scoped, tag = 'scoped memory for tpu_custom_call.1']
    #allocation11 [shape = 'u8[1024]{0}', space=vmem, size = 0x400, scoped, tag = 'input window, operand 4, single buffered']
    #allocation12 [shape = 'u8[131072]{0}', space=vmem, size = 0x20000, scoped, tag = 'input window, operand 5, single buffered']
    #allocation13 [shape = 's32[1]{0}', space=sflag, size = 0x4, scoped, tag = 'scoped memory for tpu_custom_call.1']
    #allocation14 [shape = 'u8[2048]{0}', space=vmem, size = 0x800, scoped, tag = 'output window, operand 0, single buffered']
    %13 = vsyncpa [#allocation4], 0
    %14 = vsyncpa [#allocation7], 0
    %15 = vsyncpa [#allocation10], 0
    %16 = vsyncpa [#allocation13], 0
    %17 = vsyncpa [#allocation5], 0
    // Predicated region
    $region2: #{tpu_custom_call.1} parent=1 // pred_check
      _
    $region3: #{tpu_custom_call.1} parent=1 // pred_check_branch
      %19 = sbr.rel (0) target = $region5
    $region4: #{tpu_custom_call.1} parent=1 // pred_region
      %s21 = ssub.s32 896, 896
      %22 = vsyncadd [#allocation4], %s21
      %s24 = sshll.u32 [#allocation3], 4
      %s25 = int_to_ptr.vmem [resolvable:$true] %s24
      %27 = dma.hbm_to_vmem [thread:$0]  %s0, 896, %s25, [#allocation4]
    $region5: #{tpu_custom_call.1} parent=1 // pred_fallthru
      _
    // Predicated region
    $region6: #{tpu_custom_call.1} parent=1 // pred_check
      _
    $region7: #{tpu_custom_call.1} parent=1 // pred_check_branch
      %29 = sbr.rel (0) target = $region9
    $region8: #{tpu_custom_call.1} parent=1 // pred_region
      %s31 = ssub.s32 50176, 50176
      %32 = vsyncadd [#allocation7], %s31
      %s33 = sshll.u32 [#allocation6], 4
      %s34 = int_to_ptr.vmem [resolvable:$true] %s33
      %39 = dma.hbm_to_vmem [thread:$0]  %s1, 50176, %s34, [#allocation7], 512, 512, 32
    $region9: #{tpu_custom_call.1} parent=1 // pred_fallthru
      _
    // Predicated region
    $region10: #{tpu_custom_call.1} parent=1 // pred_check
      _
    $region11: #{tpu_custom_call.1} parent=1 // pred_check_branch
      %41 = sbr.rel (0) target = $region13
    $region12: #{tpu_custom_call.1} parent=1 // pred_region
      %s43 = ssub.s32 64, 64
      %44 = vsyncadd [#allocation7], %s43
      %s46 = sshll.u32 [#allocation8], 4
      %s47 = int_to_ptr.vmem [resolvable:$true] %s46
      %49 = dma.hbm_to_vmem [thread:$0]  %s2, 64, %s47, [#allocation7]
    $region13: #{tpu_custom_call.1} parent=1 // pred_fallthru
      _
    // Predicated region
    $region14: #{tpu_custom_call.1} parent=1 // pred_check
      _
    $region15: #{tpu_custom_call.1} parent=1 // pred_check_branch
      %51 = sbr.rel (0) target = $region17
    $region16: #{tpu_custom_call.1} parent=1 // pred_region
      %s53 = ssub.s32 16384, 16384
      %54 = vsyncadd [#allocation10], %s53
      %s55 = sshll.u32 [#allocation9], 4
      %s56 = int_to_ptr.vmem [resolvable:$true] %s55
      %61 = dma.hbm_to_vmem [thread:$0]  %s3, 16384, %s56, [#allocation10], 256, 256, 16
    $region17: #{tpu_custom_call.1} parent=1 // pred_fallthru
      _
    // Predicated region
    $region18: #{tpu_custom_call.1} parent=1 // pred_check
      _
    $region19: #{tpu_custom_call.1} parent=1 // pred_check_branch
      %63 = sbr.rel (0) target = $region21
    $region20: #{tpu_custom_call.1} parent=1 // pred_region
      %s65 = ssub.s32 32, 32
      %66 = vsyncadd [#allocation10], %s65
      %s68 = sshll.u32 [#allocation11], 4
      %s69 = int_to_ptr.vmem [resolvable:$true] %s68
      %71 = dma.hbm_to_vmem [thread:$0]  %s4, 32, %s69, [#allocation10]
    $region21: #{tpu_custom_call.1} parent=1 // pred_fallthru
      _
    // Predicated region
    $region22: #{tpu_custom_call.1} parent=1 // pred_check
      _
    $region23: #{tpu_custom_call.1} parent=1 // pred_check_branch
      %73 = sbr.rel (0) target = $region25
    $region24: #{tpu_custom_call.1} parent=1 // pred_region
      %s75 = ssub.s32 4096, 4096
      %76 = vsyncadd [#allocation13], %s75
      %s77 = sshll.u32 [#allocation12], 4
      %s78 = int_to_ptr.vmem [resolvable:$true] %s77
      %83 = dma.hbm_to_vmem [thread:$0]  %s5, 4096, %s78, [#allocation13], 128, 128, 8
    $region25: #{tpu_custom_call.1} parent=1 // pred_fallthru
      _
    // Predicated region
    $region26: #{tpu_custom_call.1} parent=1 // pred_check
      _
    $region27: #{tpu_custom_call.1} parent=1 // pred_check_branch
      %85 = sbr.rel (0) target = $region29
    $region28: #{tpu_custom_call.1} parent=1 // pred_region
      _
    $region29: #{tpu_custom_call.1} parent=1 // pred_fallthru
      _
    // Predicated region
    $region30: #{tpu_custom_call.1} parent=1 // pred_check
      _
    $region31: #{tpu_custom_call.1} parent=1 // pred_check_branch
      %87 = sbr.rel (0) target = $region33
    $region32: #{tpu_custom_call.1} parent=1 // pred_region
      %88 = dma.done [#allocation4], 896
    $region33: #{tpu_custom_call.1} parent=1 // pred_fallthru
      _
    // Predicated region
    $region34: #{tpu_custom_call.1} parent=1 // pred_check
      _
    $region35: #{tpu_custom_call.1} parent=1 // pred_check_branch
      %90 = sbr.rel (0) target = $region37
    $region36: #{tpu_custom_call.1} parent=1 // pred_region
      %91 = dma.done [#allocation7], 50176
    $region37: #{tpu_custom_call.1} parent=1 // pred_fallthru
      _
    // Predicated region
    $region38: #{tpu_custom_call.1} parent=1 // pred_check
      _
    $region39: #{tpu_custom_call.1} parent=1 // pred_check_branch
      %93 = sbr.rel (0) target = $region41
    $region40: #{tpu_custom_call.1} parent=1 // pred_region
      %94 = dma.done [#allocation7], 64
    $region41: #{tpu_custom_call.1} parent=1 // pred_fallthru
      _
    // Predicated region
    $region42: #{tpu_custom_call.1} parent=1 // pred_check
      _
    $region43: #{tpu_custom_call.1} parent=1 // pred_check_branch
      %96 = sbr.rel (0) target = $region45
    $region44: #{tpu_custom_call.1} parent=1 // pred_region
      %97 = dma.done [#allocation10], 16384
    $region45: #{tpu_custom_call.1} parent=1 // pred_fallthru
      _
    // Predicated region
    $region46: #{tpu_custom_call.1} parent=1 // pred_check
      _
    $region47: #{tpu_custom_call.1} parent=1 // pred_check_branch
      %99 = sbr.rel (0) target = $region49
    $region48: #{tpu_custom_call.1} parent=1 // pred_region
      %100 = dma.done [#allocation10], 32
    $region49: #{tpu_custom_call.1} parent=1 // pred_fallthru
      _
    // Predicated region
    $region50: #{tpu_custom_call.1} parent=1 // pred_check
      _
    $region51: #{tpu_custom_call.1} parent=1 // pred_check_branch
      %102 = sbr.rel (0) target = $region53
    $region52: #{tpu_custom_call.1} parent=1 // pred_region
      %103 = dma.done [#allocation13], 4096
    $region53: #{tpu_custom_call.1} parent=1 // pred_fallthru
      _
    %v105 = vld [vmem:[#allocation3] sm:$0xff]
    %v106 = vld [vmem:[#allocation3 + $0x8] sm:$0xff]
    %v107 = vld [vmem:[#allocation3 + $0x10] sm:$0xff]
    %v108 = vld [vmem:[#allocation3 + $0x18] sm:$0xff]
    %v109 = vld [vmem:[#allocation3 + $0x20] sm:$0xff]
    %v110 = vld [vmem:[#allocation3 + $0x28] sm:$0xff]
    %v111 = vld [vmem:[#allocation3 + $0x30] sm:$0xff]
    %v112 = vpack.c.bf16 %v105, %v105
    %v113 = vpack.c.bf16 %v106, %v106
    %v114 = vpack.c.bf16 %v107, %v107
    %v115 = vpack.c.bf16 %v108, %v108
    %v116 = vpack.c.bf16 %v109, %v109
    %v117 = vpack.c.bf16 %v110, %v110
    %v118 = vpack.c.bf16 %v111, %v111
    %v119 = vld [vmem:[#allocation6] sm:$0xff]
    %v120 = vld [vmem:[#allocation6 + $0x8] sm:$0xff]
    %v121 = vld [vmem:[#allocation6 + $0x10] sm:$0xff]
    %v122 = vld [vmem:[#allocation6 + $0x18] sm:$0xff]
    %v123 = vld [vmem:[#allocation6 + $0x20] sm:$0xff]
    %v124 = vld [vmem:[#allocation6 + $0x28] sm:$0xff]
    %v125 = vld [vmem:[#allocation6 + $0x30] sm:$0xff]
    %v126 = vld [vmem:[#allocation6 + $0x38] sm:$0xff]
    %v127 = vld [vmem:[#allocation6 + $0x40] sm:$0xff]
    %v128 = vld [vmem:[#allocation6 + $0x48] sm:$0xff]
    %v129 = vld [vmem:[#allocation6 + $0x50] sm:$0xff]
    %v130 = vld [vmem:[#allocation6 + $0x58] sm:$0xff]
    %v131 = vld [vmem:[#allocation6 + $0x60] sm:$0xff]
    %v132 = vld [vmem:[#allocation6 + $0x68] sm:$0xff]
    %v133 = vld [vmem:[#allocation6 + $0x70] sm:$0xff]
    %v134 = vld [vmem:[#allocation6 + $0x78] sm:$0xff]
    %v135 = vld [vmem:[#allocation6 + $0x80] sm:$0xff]
    %v136 = vld [vmem:[#allocation6 + $0x88] sm:$0xff]
    %v137 = vld [vmem:[#allocation6 + $0x90] sm:$0xff]
    %v138 = vld [vmem:[#allocation6 + $0x98] sm:$0xff]
    %v139 = vld [vmem:[#allocation6 + $0xa0] sm:$0xff]
    %v140 = vld [vmem:[#allocation6 + $0xa8] sm:$0xff]
    %v141 = vld [vmem:[#allocation6 + $0xb0] sm:$0xff]
    %v142 = vld [vmem:[#allocation6 + $0xb8] sm:$0xff]
    %v143 = vld [vmem:[#allocation6 + $0xc0] sm:$0xff]
    %v144 = vld [vmem:[#allocation6 + $0xc8] sm:$0xff]
    %v145 = vld [vmem:[#allocation6 + $0xd0] sm:$0xff]
    %v146 = vld [vmem:[#allocation6 + $0xd8] sm:$0xff]
    %v147 = vld [vmem:[#allocation6 + $0xe0] sm:$0xff]
    %v148 = vld [vmem:[#allocation6 + $0xe8] sm:$0xff]
    %v149 = vld [vmem:[#allocation6 + $0xf0] sm:$0xff]
    %v150 = vld [vmem:[#allocation6 + $0xf8] sm:$0xff]
    %v151 = vld [vmem:[#allocation6 + $0x100] sm:$0xff]
    %v152 = vld [vmem:[#allocation6 + $0x108] sm:$0xff]
    %v153 = vld [vmem:[#allocation6 + $0x110] sm:$0xff]
    %v154 = vld [vmem:[#allocation6 + $0x118] sm:$0xff]
    %v155 = vld [vmem:[#allocation6 + $0x120] sm:$0xff]
    %v156 = vld [vmem:[#allocation6 + $0x128] sm:$0xff]
    %v157 = vld [vmem:[#allocation6 + $0x130] sm:$0xff]
    %v158 = vld [vmem:[#allocation6 + $0x138] sm:$0xff]
    %v159 = vld [vmem:[#allocation6 + $0x140] sm:$0xff]
    %v160 = vld [vmem:[#allocation6 + $0x148] sm:$0xff]
    %v161 = vld [vmem:[#allocation6 + $0x150] sm:$0xff]
    %v162 = vld [vmem:[#allocation6 + $0x158] sm:$0xff]
    %v163 = vld [vmem:[#allocation6 + $0x160] sm:$0xff]
    %v164 = vld [vmem:[#allocation6 + $0x168] sm:$0xff]
    %v165 = vld [vmem:[#allocation6 + $0x170] sm:$0xff]
    %v166 = vld [vmem:[#allocation6 + $0x178] sm:$0xff]
    %v167 = vld [vmem:[#allocation6 + $0x180] sm:$0xff]
    %v168 = vld [vmem:[#allocation6 + $0x188] sm:$0xff]
    %v169 = vld [vmem:[#allocation6 + $0x190] sm:$0xff]
    %v170 = vld [vmem:[#allocation6 + $0x198] sm:$0xff]
    %v171 = vld [vmem:[#allocation6 + $0x1a0] sm:$0xff]
    %v172 = vld [vmem:[#allocation6 + $0x1a8] sm:$0xff]
    %v173 = vld [vmem:[#allocation6 + $0x1b0] sm:$0xff]
    %v174 = vld [vmem:[#allocation6 + $0x1b8] sm:$0xff]
    %v175 = vld [vmem:[#allocation6 + $0x1c0] sm:$0xff]
    %v176 = vld [vmem:[#allocation6 + $0x1c8] sm:$0xff]
    %v177 = vld [vmem:[#allocation6 + $0x1d0] sm:$0xff]
    %v178 = vld [vmem:[#allocation6 + $0x1d8] sm:$0xff]
    %v179 = vld [vmem:[#allocation6 + $0x1e0] sm:$0xff]
    %v180 = vld [vmem:[#allocation6 + $0x1e8] sm:$0xff]
    %v181 = vld [vmem:[#allocation6 + $0x1f0] sm:$0xff]
    %v182 = vld [vmem:[#allocation6 + $0x1f8] sm:$0xff]
    %v183 = vld [vmem:[#allocation6 + $0x200] sm:$0xff]
    %v184 = vld [vmem:[#allocation6 + $0x208] sm:$0xff]
    %v185 = vld [vmem:[#allocation6 + $0x210] sm:$0xff]
    %v186 = vld [vmem:[#allocation6 + $0x218] sm:$0xff]
    %v187 = vld [vmem:[#allocation6 + $0x220] sm:$0xff]
    %v188 = vld [vmem:[#allocation6 + $0x228] sm:$0xff]
    %v189 = vld [vmem:[#allocation6 + $0x230] sm:$0xff]
    %v190 = vld [vmem:[#allocation6 + $0x238] sm:$0xff]
    %v191 = vld [vmem:[#allocation6 + $0x240] sm:$0xff]
    %v192 = vld [vmem:[#allocation6 + $0x248] sm:$0xff]
    %v193 = vld [vmem:[#allocation6 + $0x250] sm:$0xff]
    %v194 = vld [vmem:[#allocation6 + $0x258] sm:$0xff]
    %v195 = vld [vmem:[#allocation6 + $0x260] sm:$0xff]
    %v196 = vld [vmem:[#allocation6 + $0x268] sm:$0xff]
    %v197 = vld [vmem:[#allocation6 + $0x270] sm:$0xff]
    %v198 = vld [vmem:[#allocation6 + $0x278] sm:$0xff]
    %v199 = vld [vmem:[#allocation6 + $0x280] sm:$0xff]
    %v200 = vld [vmem:[#allocation6 + $0x288] sm:$0xff]
    %v201 = vld [vmem:[#allocation6 + $0x290] sm:$0xff]
    %v202 = vld [vmem:[#allocation6 + $0x298] sm:$0xff]
    %v203 = vld [vmem:[#allocation6 + $0x2a0] sm:$0xff]
    %v204 = vld [vmem:[#allocation6 + $0x2a8] sm:$0xff]
    %v205 = vld [vmem:[#allocation6 + $0x2b0] sm:$0xff]
    %v206 = vld [vmem:[#allocation6 + $0x2b8] sm:$0xff]
    %v207 = vld [vmem:[#allocation6 + $0x2c0] sm:$0xff]
    %v208 = vld [vmem:[#allocation6 + $0x2c8] sm:$0xff]
    %v209 = vld [vmem:[#allocation6 + $0x2d0] sm:$0xff]
    %v210 = vld [vmem:[#allocation6 + $0x2d8] sm:$0xff]
    %v211 = vld [vmem:[#allocation6 + $0x2e0] sm:$0xff]
    %v212 = vld [vmem:[#allocation6 + $0x2e8] sm:$0xff]
    %v213 = vld [vmem:[#allocation6 + $0x2f0] sm:$0xff]
    %v214 = vld [vmem:[#allocation6 + $0x2f8] sm:$0xff]
    %v215 = vld [vmem:[#allocation6 + $0x300] sm:$0xff]
    %v216 = vld [vmem:[#allocation6 + $0x308] sm:$0xff]
    %v217 = vld [vmem:[#allocation6 + $0x310] sm:$0xff]
    %v218 = vld [vmem:[#allocation6 + $0x318] sm:$0xff]
    %v219 = vld [vmem:[#allocation6 + $0x320] sm:$0xff]
    %v220 = vld [vmem:[#allocation6 + $0x328] sm:$0xff]
    %v221 = vld [vmem:[#allocation6 + $0x330] sm:$0xff]
    %v222 = vld [vmem:[#allocation6 + $0x338] sm:$0xff]
    %v223 = vld [vmem:[#allocation6 + $0x340] sm:$0xff]
    %v224 = vld [vmem:[#allocation6 + $0x348] sm:$0xff]
    %v225 = vld [vmem:[#allocation6 + $0x350] sm:$0xff]
    %v226 = vld [vmem:[#allocation6 + $0x358] sm:$0xff]
    %v227 = vld [vmem:[#allocation6 + $0x360] sm:$0xff]
    %v228 = vld [vmem:[#allocation6 + $0x368] sm:$0xff]
    %v229 = vld [vmem:[#allocation6 + $0x370] sm:$0xff]
    %v230 = vld [vmem:[#allocation6 + $0x378] sm:$0xff]
    %v231 = vld [vmem:[#allocation6 + $0x380] sm:$0xff]
    %v232 = vld [vmem:[#allocation6 + $0x388] sm:$0xff]
    %v233 = vld [vmem:[#allocation6 + $0x390] sm:$0xff]
    %v234 = vld [vmem:[#allocation6 + $0x398] sm:$0xff]
    %v235 = vld [vmem:[#allocation6 + $0x3a0] sm:$0xff]
    %v236 = vld [vmem:[#allocation6 + $0x3a8] sm:$0xff]
    %v237 = vld [vmem:[#allocation6 + $0x3b0] sm:$0xff]
    %v238 = vld [vmem:[#allocation6 + $0x3b8] sm:$0xff]
    %v239 = vld [vmem:[#allocation6 + $0x3c0] sm:$0xff]
    %v240 = vld [vmem:[#allocation6 + $0x3c8] sm:$0xff]
    %v241 = vld [vmem:[#allocation6 + $0x3d0] sm:$0xff]
    %v242 = vld [vmem:[#allocation6 + $0x3d8] sm:$0xff]
    %v243 = vld [vmem:[#allocation6 + $0x3e0] sm:$0xff]
    %v244 = vld [vmem:[#allocation6 + $0x3e8] sm:$0xff]
    %v245 = vld [vmem:[#allocation6 + $0x3f0] sm:$0xff]
    %v246 = vld [vmem:[#allocation6 + $0x3f8] sm:$0xff]
    %v247 = vld [vmem:[#allocation6 + $0x400] sm:$0xff]
    %v248 = vld [vmem:[#allocation6 + $0x408] sm:$0xff]
    %v249 = vld [vmem:[#allocation6 + $0x410] sm:$0xff]
    %v250 = vld [vmem:[#allocation6 + $0x418] sm:$0xff]
    %v251 = vld [vmem:[#allocation6 + $0x420] sm:$0xff]
    %v252 = vld [vmem:[#allocation6 + $0x428] sm:$0xff]
    %v253 = vld [vmem:[#allocation6 + $0x430] sm:$0xff]
    %v254 = vld [vmem:[#allocation6 + $0x438] sm:$0xff]
    %v255 = vld [vmem:[#allocation6 + $0x440] sm:$0xff]
    %v256 = vld [vmem:[#allocation6 + $0x448] sm:$0xff]
    %v257 = vld [vmem:[#allocation6 + $0x450] sm:$0xff]
    %v258 = vld [vmem:[#allocation6 + $0x458] sm:$0xff]
    %v259 = vld [vmem:[#allocation6 + $0x460] sm:$0xff]
    %v260 = vld [vmem:[#allocation6 + $0x468] sm:$0xff]
    %v261 = vld [vmem:[#allocation6 + $0x470] sm:$0xff]
    %v262 = vld [vmem:[#allocation6 + $0x478] sm:$0xff]
    %v263 = vld [vmem:[#allocation6 + $0x480] sm:$0xff]
    %v264 = vld [vmem:[#allocation6 + $0x488] sm:$0xff]
    %v265 = vld [vmem:[#allocation6 + $0x490] sm:$0xff]
    %v266 = vld [vmem:[#allocation6 + $0x498] sm:$0xff]
    %v267 = vld [vmem:[#allocation6 + $0x4a0] sm:$0xff]
    %v268 = vld [vmem:[#allocation6 + $0x4a8] sm:$0xff]
    %v269 = vld [vmem:[#allocation6 + $0x4b0] sm:$0xff]
    %v270 = vld [vmem:[#allocation6 + $0x4b8] sm:$0xff]
    %v271 = vld [vmem:[#allocation6 + $0x4c0] sm:$0xff]
    %v272 = vld [vmem:[#allocation6 + $0x4c8] sm:$0xff]
    %v273 = vld [vmem:[#allocation6 + $0x4d0] sm:$0xff]
    %v274 = vld [vmem:[#allocation6 + $0x4d8] sm:$0xff]
    %v275 = vld [vmem:[#allocation6 + $0x4e0] sm:$0xff]
    %v276 = vld [vmem:[#allocation6 + $0x4e8] sm:$0xff]
    %v277 = vld [vmem:[#allocation6 + $0x4f0] sm:$0xff]
    %v278 = vld [vmem:[#allocation6 + $0x4f8] sm:$0xff]
    %v279 = vld [vmem:[#allocation6 + $0x500] sm:$0xff]
    %v280 = vld [vmem:[#allocation6 + $0x508] sm:$0xff]
    %v281 = vld [vmem:[#allocation6 + $0x510] sm:$0xff]
    %v282 = vld [vmem:[#allocation6 + $0x518] sm:$0xff]
    %v283 = vld [vmem:[#allocation6 + $0x520] sm:$0xff]
    %v284 = vld [vmem:[#allocation6 + $0x528] sm:$0xff]
    %v285 = vld [vmem:[#allocation6 + $0x530] sm:$0xff]
    %v286 = vld [vmem:[#allocation6 + $0x538] sm:$0xff]
    %v287 = vld [vmem:[#allocation6 + $0x540] sm:$0xff]
    %v288 = vld [vmem:[#allocation6 + $0x548] sm:$0xff]
    %v289 = vld [vmem:[#allocation6 + $0x550] sm:$0xff]
    %v290 = vld [vmem:[#allocation6 + $0x558] sm:$0xff]
    %v291 = vld [vmem:[#allocation6 + $0x560] sm:$0xff]
    %v292 = vld [vmem:[#allocation6 + $0x568] sm:$0xff]
    %v293 = vld [vmem:[#allocation6 + $0x570] sm:$0xff]
    %v294 = vld [vmem:[#allocation6 + $0x578] sm:$0xff]
    %v295 = vld [vmem:[#allocation6 + $0x580] sm:$0xff]
    %v296 = vld [vmem:[#allocation6 + $0x588] sm:$0xff]
    %v297 = vld [vmem:[#allocation6 + $0x590] sm:$0xff]
    %v298 = vld [vmem:[#allocation6 + $0x598] sm:$0xff]
    %v299 = vld [vmem:[#allocation6 + $0x5a0] sm:$0xff]
    %v300 = vld [vmem:[#allocation6 + $0x5a8] sm:$0xff]
    %v301 = vld [vmem:[#allocation6 + $0x5b0] sm:$0xff]
    %v302 = vld [vmem:[#allocation6 + $0x5b8] sm:$0xff]
    %v303 = vld [vmem:[#allocation6 + $0x5c0] sm:$0xff]
    %v304 = vld [vmem:[#allocation6 + $0x5c8] sm:$0xff]
    %v305 = vld [vmem:[#allocation6 + $0x5d0] sm:$0xff]
    %v306 = vld [vmem:[#allocation6 + $0x5d8] sm:$0xff]
    %v307 = vld [vmem:[#allocation6 + $0x5e0] sm:$0xff]
    %v308 = vld [vmem:[#allocation6 + $0x5e8] sm:$0xff]
    %v309 = vld [vmem:[#allocation6 + $0x5f0] sm:$0xff]
    %v310 = vld [vmem:[#allocation6 + $0x5f8] sm:$0xff]
    %v311 = vld [vmem:[#allocation6 + $0x600] sm:$0xff]
    %v312 = vld [vmem:[#allocation6 + $0x608] sm:$0xff]
    %v313 = vld [vmem:[#allocation6 + $0x610] sm:$0xff]
    %v314 = vld [vmem:[#allocation6 + $0x618] sm:$0xff]
    %v315 = vld [vmem:[#allocation6 + $0x620] sm:$0xff]
    %v316 = vld [vmem:[#allocation6 + $0x628] sm:$0xff]
    %v317 = vld [vmem:[#allocation6 + $0x630] sm:$0xff]
    %v318 = vld [vmem:[#allocation6 + $0x638] sm:$0xff]
    %v319 = vld [vmem:[#allocation6 + $0x640] sm:$0xff]
    %v320 = vld [vmem:[#allocation6 + $0x648] sm:$0xff]
    %v321 = vld [vmem:[#allocation6 + $0x650] sm:$0xff]
    %v322 = vld [vmem:[#allocation6 + $0x658] sm:$0xff]
    %v323 = vld [vmem:[#allocation6 + $0x660] sm:$0xff]
    %v324 = vld [vmem:[#allocation6 + $0x668] sm:$0xff]
    %v325 = vld [vmem:[#allocation6 + $0x670] sm:$0xff]
    %v326 = vld [vmem:[#allocation6 + $0x678] sm:$0xff]
    %v327 = vld [vmem:[#allocation6 + $0x680] sm:$0xff]
    %v328 = vld [vmem:[#allocation6 + $0x688] sm:$0xff]
    %v329 = vld [vmem:[#allocation6 + $0x690] sm:$0xff]
    %v330 = vld [vmem:[#allocation6 + $0x698] sm:$0xff]
    %v331 = vld [vmem:[#allocation6 + $0x6a0] sm:$0xff]
    %v332 = vld [vmem:[#allocation6 + $0x6a8] sm:$0xff]
    %v333 = vld [vmem:[#allocation6 + $0x6b0] sm:$0xff]
    %v334 = vld [vmem:[#allocation6 + $0x6b8] sm:$0xff]
    %v335 = vld [vmem:[#allocation6 + $0x6c0] sm:$0xff]
    %v336 = vld [vmem:[#allocation6 + $0x6c8] sm:$0xff]
    %v337 = vld [vmem:[#allocation6 + $0x6d0] sm:$0xff]
    %v338 = vld [vmem:[#allocation6 + $0x6d8] sm:$0xff]
    %v339 = vld [vmem:[#allocation6 + $0x6e0] sm:$0xff]
    %v340 = vld [vmem:[#allocation6 + $0x6e8] sm:$0xff]
    %v341 = vld [vmem:[#allocation6 + $0x6f0] sm:$0xff]
    %v342 = vld [vmem:[#allocation6 + $0x6f8] sm:$0xff]
    %v343 = vld [vmem:[#allocation6 + $0x700] sm:$0xff]
    %v344 = vld [vmem:[#allocation6 + $0x708] sm:$0xff]
    %v345 = vld [vmem:[#allocation6 + $0x710] sm:$0xff]
    %v346 = vld [vmem:[#allocation6 + $0x718] sm:$0xff]
    %v347 = vld [vmem:[#allocation6 + $0x720] sm:$0xff]
    %v348 = vld [vmem:[#allocation6 + $0x728] sm:$0xff]
    %v349 = vld [vmem:[#allocation6 + $0x730] sm:$0xff]
    %v350 = vld [vmem:[#allocation6 + $0x738] sm:$0xff]
    %v351 = vld [vmem:[#allocation6 + $0x740] sm:$0xff]
    %v352 = vld [vmem:[#allocation6 + $0x748] sm:$0xff]
    %v353 = vld [vmem:[#allocation6 + $0x750] sm:$0xff]
    %v354 = vld [vmem:[#allocation6 + $0x758] sm:$0xff]
    %v355 = vld [vmem:[#allocation6 + $0x760] sm:$0xff]
    %v356 = vld [vmem:[#allocation6 + $0x768] sm:$0xff]
    %v357 = vld [vmem:[#allocation6 + $0x770] sm:$0xff]
    %v358 = vld [vmem:[#allocation6 + $0x778] sm:$0xff]
    %v359 = vld [vmem:[#allocation6 + $0x780] sm:$0xff]
    %v360 = vld [vmem:[#allocation6 + $0x788] sm:$0xff]
    %v361 = vld [vmem:[#allocation6 + $0x790] sm:$0xff]
    %v362 = vld [vmem:[#allocation6 + $0x798] sm:$0xff]
    %v363 = vld [vmem:[#allocation6 + $0x7a0] sm:$0xff]
    %v364 = vld [vmem:[#allocation6 + $0x7a8] sm:$0xff]
    %v365 = vld [vmem:[#allocation6 + $0x7b0] sm:$0xff]
    %v366 = vld [vmem:[#allocation6 + $0x7b8] sm:$0xff]
    %v367 = vld [vmem:[#allocation6 + $0x7c0] sm:$0xff]
    %v368 = vld [vmem:[#allocation6 + $0x7c8] sm:$0xff]
    %v369 = vld [vmem:[#allocation6 + $0x7d0] sm:$0xff]
    %v370 = vld [vmem:[#allocation6 + $0x7d8] sm:$0xff]
    %v371 = vld [vmem:[#allocation6 + $0x7e0] sm:$0xff]
    %v372 = vld [vmem:[#allocation6 + $0x7e8] sm:$0xff]
    %v373 = vld [vmem:[#allocation6 + $0x7f0] sm:$0xff]
    %v374 = vld [vmem:[#allocation6 + $0x7f8] sm:$0xff]
    %v375 = vld [vmem:[#allocation6 + $0x800] sm:$0xff]
    %v376 = vld [vmem:[#allocation6 + $0x808] sm:$0xff]
    %v377 = vld [vmem:[#allocation6 + $0x810] sm:$0xff]
    %v378 = vld [vmem:[#allocation6 + $0x818] sm:$0xff]
    %v379 = vld [vmem:[#allocation6 + $0x820] sm:$0xff]
    %v380 = vld [vmem:[#allocation6 + $0x828] sm:$0xff]
    %v381 = vld [vmem:[#allocation6 + $0x830] sm:$0xff]
    %v382 = vld [vmem:[#allocation6 + $0x838] sm:$0xff]
    %v383 = vld [vmem:[#allocation6 + $0x840] sm:$0xff]
    %v384 = vld [vmem:[#allocation6 + $0x848] sm:$0xff]
    %v385 = vld [vmem:[#allocation6 + $0x850] sm:$0xff]
    %v386 = vld [vmem:[#allocation6 + $0x858] sm:$0xff]
    %v387 = vld [vmem:[#allocation6 + $0x860] sm:$0xff]
    %v388 = vld [vmem:[#allocation6 + $0x868] sm:$0xff]
    %v389 = vld [vmem:[#allocation6 + $0x870] sm:$0xff]
    %v390 = vld [vmem:[#allocation6 + $0x878] sm:$0xff]
    %v391 = vld [vmem:[#allocation6 + $0x880] sm:$0xff]
    %v392 = vld [vmem:[#allocation6 + $0x888] sm:$0xff]
    %v393 = vld [vmem:[#allocation6 + $0x890] sm:$0xff]
    %v394 = vld [vmem:[#allocation6 + $0x898] sm:$0xff]
    %v395 = vld [vmem:[#allocation6 + $0x8a0] sm:$0xff]
    %v396 = vld [vmem:[#allocation6 + $0x8a8] sm:$0xff]
    %v397 = vld [vmem:[#allocation6 + $0x8b0] sm:$0xff]
    %v398 = vld [vmem:[#allocation6 + $0x8b8] sm:$0xff]
    %v399 = vld [vmem:[#allocation6 + $0x8c0] sm:$0xff]
    %v400 = vld [vmem:[#allocation6 + $0x8c8] sm:$0xff]
    %v401 = vld [vmem:[#allocation6 + $0x8d0] sm:$0xff]
    %v402 = vld [vmem:[#allocation6 + $0x8d8] sm:$0xff]
    %v403 = vld [vmem:[#allocation6 + $0x8e0] sm:$0xff]
    %v404 = vld [vmem:[#allocation6 + $0x8e8] sm:$0xff]
    %v405 = vld [vmem:[#allocation6 + $0x8f0] sm:$0xff]
    %v406 = vld [vmem:[#allocation6 + $0x8f8] sm:$0xff]
    %v407 = vld [vmem:[#allocation6 + $0x900] sm:$0xff]
    %v408 = vld [vmem:[#allocation6 + $0x908] sm:$0xff]
    %v409 = vld [vmem:[#allocation6 + $0x910] sm:$0xff]
    %v410 = vld [vmem:[#allocation6 + $0x918] sm:$0xff]
    %v411 = vld [vmem:[#allocation6 + $0x920] sm:$0xff]
    %v412 = vld [vmem:[#allocation6 + $0x928] sm:$0xff]
    %v413 = vld [vmem:[#allocation6 + $0x930] sm:$0xff]
    %v414 = vld [vmem:[#allocation6 + $0x938] sm:$0xff]
    %v415 = vld [vmem:[#allocation6 + $0x940] sm:$0xff]
    %v416 = vld [vmem:[#allocation6 + $0x948] sm:$0xff]
    %v417 = vld [vmem:[#allocation6 + $0x950] sm:$0xff]
    %v418 = vld [vmem:[#allocation6 + $0x958] sm:$0xff]
    %v419 = vld [vmem:[#allocation6 + $0x960] sm:$0xff]
    %v420 = vld [vmem:[#allocation6 + $0x968] sm:$0xff]
    %v421 = vld [vmem:[#allocation6 + $0x970] sm:$0xff]
    %v422 = vld [vmem:[#allocation6 + $0x978] sm:$0xff]
    %v423 = vld [vmem:[#allocation6 + $0x980] sm:$0xff]
    %v424 = vld [vmem:[#allocation6 + $0x988] sm:$0xff]
    %v425 = vld [vmem:[#allocation6 + $0x990] sm:$0xff]
    %v426 = vld [vmem:[#allocation6 + $0x998] sm:$0xff]
    %v427 = vld [vmem:[#allocation6 + $0x9a0] sm:$0xff]
    %v428 = vld [vmem:[#allocation6 + $0x9a8] sm:$0xff]
    %v429 = vld [vmem:[#allocation6 + $0x9b0] sm:$0xff]
    %v430 = vld [vmem:[#allocation6 + $0x9b8] sm:$0xff]
    %v431 = vld [vmem:[#allocation6 + $0x9c0] sm:$0xff]
    %v432 = vld [vmem:[#allocation6 + $0x9c8] sm:$0xff]
    %v433 = vld [vmem:[#allocation6 + $0x9d0] sm:$0xff]
    %v434 = vld [vmem:[#allocation6 + $0x9d8] sm:$0xff]
    %v435 = vld [vmem:[#allocation6 + $0x9e0] sm:$0xff]
    %v436 = vld [vmem:[#allocation6 + $0x9e8] sm:$0xff]
    %v437 = vld [vmem:[#allocation6 + $0x9f0] sm:$0xff]
    %v438 = vld [vmem:[#allocation6 + $0x9f8] sm:$0xff]
    %v439 = vld [vmem:[#allocation6 + $0xa00] sm:$0xff]
    %v440 = vld [vmem:[#allocation6 + $0xa08] sm:$0xff]
    %v441 = vld [vmem:[#allocation6 + $0xa10] sm:$0xff]
    %v442 = vld [vmem:[#allocation6 + $0xa18] sm:$0xff]
    %v443 = vld [vmem:[#allocation6 + $0xa20] sm:$0xff]
    %v444 = vld [vmem:[#allocation6 + $0xa28] sm:$0xff]
    %v445 = vld [vmem:[#allocation6 + $0xa30] sm:$0xff]
    %v446 = vld [vmem:[#allocation6 + $0xa38] sm:$0xff]
    %v447 = vld [vmem:[#allocation6 + $0xa40] sm:$0xff]
    %v448 = vld [vmem:[#allocation6 + $0xa48] sm:$0xff]
    %v449 = vld [vmem:[#allocation6 + $0xa50] sm:$0xff]
    %v450 = vld [vmem:[#allocation6 + $0xa58] sm:$0xff]
    %v451 = vld [vmem:[#allocation6 + $0xa60] sm:$0xff]
    %v452 = vld [vmem:[#allocation6 + $0xa68] sm:$0xff]
    %v453 = vld [vmem:[#allocation6 + $0xa70] sm:$0xff]
    %v454 = vld [vmem:[#allocation6 + $0xa78] sm:$0xff]
    %v455 = vld [vmem:[#allocation6 + $0xa80] sm:$0xff]
    %v456 = vld [vmem:[#allocation6 + $0xa88] sm:$0xff]
    %v457 = vld [vmem:[#allocation6 + $0xa90] sm:$0xff]
    %v458 = vld [vmem:[#allocation6 + $0xa98] sm:$0xff]
    %v459 = vld [vmem:[#allocation6 + $0xaa0] sm:$0xff]
    %v460 = vld [vmem:[#allocation6 + $0xaa8] sm:$0xff]
    %v461 = vld [vmem:[#allocation6 + $0xab0] sm:$0xff]
    %v462 = vld [vmem:[#allocation6 + $0xab8] sm:$0xff]
    %v463 = vld [vmem:[#allocation6 + $0xac0] sm:$0xff]
    %v464 = vld [vmem:[#allocation6 + $0xac8] sm:$0xff]
    %v465 = vld [vmem:[#allocation6 + $0xad0] sm:$0xff]
    %v466 = vld [vmem:[#allocation6 + $0xad8] sm:$0xff]
    %v467 = vld [vmem:[#allocation6 + $0xae0] sm:$0xff]
    %v468 = vld [vmem:[#allocation6 + $0xae8] sm:$0xff]
    %v469 = vld [vmem:[#allocation6 + $0xaf0] sm:$0xff]
    %v470 = vld [vmem:[#allocation6 + $0xaf8] sm:$0xff]
    %v471 = vld [vmem:[#allocation6 + $0xb00] sm:$0xff]
    %v472 = vld [vmem:[#allocation6 + $0xb08] sm:$0xff]
    %v473 = vld [vmem:[#allocation6 + $0xb10] sm:$0xff]
    %v474 = vld [vmem:[#allocation6 + $0xb18] sm:$0xff]
    %v475 = vld [vmem:[#allocation6 + $0xb20] sm:$0xff]
    %v476 = vld [vmem:[#allocation6 + $0xb28] sm:$0xff]
    %v477 = vld [vmem:[#allocation6 + $0xb30] sm:$0xff]
    %v478 = vld [vmem:[#allocation6 + $0xb38] sm:$0xff]
    %v479 = vld [vmem:[#allocation6 + $0xb40] sm:$0xff]
    %v480 = vld [vmem:[#allocation6 + $0xb48] sm:$0xff]
    %v481 = vld [vmem:[#allocation6 + $0xb50] sm:$0xff]
    %v482 = vld [vmem:[#allocation6 + $0xb58] sm:$0xff]
    %v483 = vld [vmem:[#allocation6 + $0xb60] sm:$0xff]
    %v484 = vld [vmem:[#allocation6 + $0xb68] sm:$0xff]
    %v485 = vld [vmem:[#allocation6 + $0xb70] sm:$0xff]
    %v486 = vld [vmem:[#allocation6 + $0xb78] sm:$0xff]
    %v487 = vld [vmem:[#allocation6 + $0xb80] sm:$0xff]
    %v488 = vld [vmem:[#allocation6 + $0xb88] sm:$0xff]
    %v489 = vld [vmem:[#allocation6 + $0xb90] sm:$0xff]
    %v490 = vld [vmem:[#allocation6 + $0xb98] sm:$0xff]
    %v491 = vld [vmem:[#allocation6 + $0xba0] sm:$0xff]
    %v492 = vld [vmem:[#allocation6 + $0xba8] sm:$0xff]
    %v493 = vld [vmem:[#allocation6 + $0xbb0] sm:$0xff]
    %v494 = vld [vmem:[#allocation6 + $0xbb8] sm:$0xff]
    %v495 = vld [vmem:[#allocation6 + $0xbc0] sm:$0xff]
    %v496 = vld [vmem:[#allocation6 + $0xbc8] sm:$0xff]
    %v497 = vld [vmem:[#allocation6 + $0xbd0] sm:$0xff]
    %v498 = vld [vmem:[#allocation6 + $0xbd8] sm:$0xff]
    %v499 = vld [vmem:[#allocation6 + $0xbe0] sm:$0xff]
    %v500 = vld [vmem:[#allocation6 + $0xbe8] sm:$0xff]
    %v501 = vld [vmem:[#allocation6 + $0xbf0] sm:$0xff]
    %v502 = vld [vmem:[#allocation6 + $0xbf8] sm:$0xff]
    %v503 = vld [vmem:[#allocation6 + $0xc00] sm:$0xff]
    %v504 = vld [vmem:[#allocation6 + $0xc08] sm:$0xff]
    %v505 = vld [vmem:[#allocation6 + $0xc10] sm:$0xff]
    %v506 = vld [vmem:[#allocation6 + $0xc18] sm:$0xff]
    %v507 = vld [vmem:[#allocation6 + $0xc20] sm:$0xff]
    %v508 = vld [vmem:[#allocation6 + $0xc28] sm:$0xff]
    %v509 = vld [vmem:[#allocation6 + $0xc30] sm:$0xff]
    %v510 = vld [vmem:[#allocation6 + $0xc38] sm:$0xff]
    %v511 = vpack.c.bf16 %v123, %v119
    %v512 = vpack.c.bf16 %v124, %v120
    %v513 = vpack.c.bf16 %v125, %v121
    %v514 = vpack.c.bf16 %v126, %v122
    %v515 = vpack.c.bf16 %v131, %v127
    %v516 = vpack.c.bf16 %v132, %v128
    %v517 = vpack.c.bf16 %v133, %v129
    %v518 = vpack.c.bf16 %v134, %v130
    %v519 = vpack.c.bf16 %v139, %v135
    %v520 = vpack.c.bf16 %v140, %v136
    %v521 = vpack.c.bf16 %v141, %v137
    %v522 = vpack.c.bf16 %v142, %v138
    %v523 = vpack.c.bf16 %v147, %v143
    %v524 = vpack.c.bf16 %v148, %v144
    %v525 = vpack.c.bf16 %v149, %v145
    %v526 = vpack.c.bf16 %v150, %v146
    %v527 = vpack.c.bf16 %v155, %v151
    %v528 = vpack.c.bf16 %v156, %v152
    %v529 = vpack.c.bf16 %v157, %v153
    %v530 = vpack.c.bf16 %v158, %v154
    %v531 = vpack.c.bf16 %v163, %v159
    %v532 = vpack.c.bf16 %v164, %v160
    %v533 = vpack.c.bf16 %v165, %v161
    %v534 = vpack.c.bf16 %v166, %v162
    %v535 = vpack.c.bf16 %v171, %v167
    %v536 = vpack.c.bf16 %v172, %v168
    %v537 = vpack.c.bf16 %v173, %v169
    %v538 = vpack.c.bf16 %v174, %v170
    %v539 = vpack.c.bf16 %v179, %v175
    %v540 = vpack.c.bf16 %v180, %v176
    %v541 = vpack.c.bf16 %v181, %v177
    %v542 = vpack.c.bf16 %v182, %v178
    %v543 = vpack.c.bf16 %v187, %v183
    %v544 = vpack.c.bf16 %v188, %v184
    %v545 = vpack.c.bf16 %v189, %v185
    %v546 = vpack.c.bf16 %v190, %v186
    %v547 = vpack.c.bf16 %v195, %v191
    %v548 = vpack.c.bf16 %v196, %v192
    %v549 = vpack.c.bf16 %v197, %v193
    %v550 = vpack.c.bf16 %v198, %v194
    %v551 = vpack.c.bf16 %v203, %v199
    %v552 = vpack.c.bf16 %v204, %v200
    %v553 = vpack.c.bf16 %v205, %v201
    %v554 = vpack.c.bf16 %v206, %v202
    %v555 = vpack.c.bf16 %v211, %v207
    %v556 = vpack.c.bf16 %v212, %v208
    %v557 = vpack.c.bf16 %v213, %v209
    %v558 = vpack.c.bf16 %v214, %v210
    %v559 = vpack.c.bf16 %v219, %v215
    %v560 = vpack.c.bf16 %v220, %v216
    %v561 = vpack.c.bf16 %v221, %v217
    %v562 = vpack.c.bf16 %v222, %v218
    %v563 = vpack.c.bf16 %v227, %v223
    %v564 = vpack.c.bf16 %v228, %v224
    %v565 = vpack.c.bf16 %v229, %v225
    %v566 = vpack.c.bf16 %v230, %v226
    %v567 = vpack.c.bf16 %v235, %v231
    %v568 = vpack.c.bf16 %v236, %v232
    %v569 = vpack.c.bf16 %v237, %v233
    %v570 = vpack.c.bf16 %v238, %v234
    %v571 = vpack.c.bf16 %v243, %v239
    %v572 = vpack.c.bf16 %v244, %v240
    %v573 = vpack.c.bf16 %v245, %v241
    %v574 = vpack.c.bf16 %v246, %v242
    %v575 = vpack.c.bf16 %v251, %v247
    %v576 = vpack.c.bf16 %v252, %v248
    %v577 = vpack.c.bf16 %v253, %v249
    %v578 = vpack.c.bf16 %v254, %v250
    %v579 = vpack.c.bf16 %v259, %v255
    %v580 = vpack.c.bf16 %v260, %v256
    %v581 = vpack.c.bf16 %v261, %v257
    %v582 = vpack.c.bf16 %v262, %v258
    %v583 = vpack.c.bf16 %v267, %v263
    %v584 = vpack.c.bf16 %v268, %v264
    %v585 = vpack.c.bf16 %v269, %v265
    %v586 = vpack.c.bf16 %v270, %v266
    %v587 = vpack.c.bf16 %v275, %v271
    %v588 = vpack.c.bf16 %v276, %v272
    %v589 = vpack.c.bf16 %v277, %v273
    %v590 = vpack.c.bf16 %v278, %v274
    %v591 = vpack.c.bf16 %v283, %v279
    %v592 = vpack.c.bf16 %v284, %v280
    %v593 = vpack.c.bf16 %v285, %v281
    %v594 = vpack.c.bf16 %v286, %v282
    %v595 = vpack.c.bf16 %v291, %v287
    %v596 = vpack.c.bf16 %v292, %v288
    %v597 = vpack.c.bf16 %v293, %v289
    %v598 = vpack.c.bf16 %v294, %v290
    %v599 = vpack.c.bf16 %v299, %v295
    %v600 = vpack.c.bf16 %v300, %v296
    %v601 = vpack.c.bf16 %v301, %v297
    %v602 = vpack.c.bf16 %v302, %v298
    %v603 = vpack.c.bf16 %v307, %v303
    %v604 = vpack.c.bf16 %v308, %v304
    %v605 = vpack.c.bf16 %v309, %v305
    %v606 = vpack.c.bf16 %v310, %v306
    %v607 = vpack.c.bf16 %v315, %v311
    %v608 = vpack.c.bf16 %v316, %v312
    %v609 = vpack.c.bf16 %v317, %v313
    %v610 = vpack.c.bf16 %v318, %v314
    %v611 = vpack.c.bf16 %v323, %v319
    %v612 = vpack.c.bf16 %v324, %v320
    %v613 = vpack.c.bf16 %v325, %v321
    %v614 = vpack.c.bf16 %v326, %v322
    %v615 = vpack.c.bf16 %v331, %v327
    %v616 = vpack.c.bf16 %v332, %v328
    %v617 = vpack.c.bf16 %v333, %v329
    %v618 = vpack.c.bf16 %v334, %v330
    %v619 = vpack.c.bf16 %v339, %v335
    %v620 = vpack.c.bf16 %v340, %v336
    %v621 = vpack.c.bf16 %v341, %v337
    %v622 = vpack.c.bf16 %v342, %v338
    %v623 = vpack.c.bf16 %v347, %v343
    %v624 = vpack.c.bf16 %v348, %v344
    %v625 = vpack.c.bf16 %v349, %v345
    %v626 = vpack.c.bf16 %v350, %v346
    %v627 = vpack.c.bf16 %v355, %v351
    %v628 = vpack.c.bf16 %v356, %v352
    %v629 = vpack.c.bf16 %v357, %v353
    %v630 = vpack.c.bf16 %v358, %v354
    %v631 = vpack.c.bf16 %v363, %v359
    %v632 = vpack.c.bf16 %v364, %v360
    %v633 = vpack.c.bf16 %v365, %v361
    %v634 = vpack.c.bf16 %v366, %v362
    %v635 = vpack.c.bf16 %v371, %v367
    %v636 = vpack.c.bf16 %v372, %v368
    %v637 = vpack.c.bf16 %v373, %v369
    %v638 = vpack.c.bf16 %v374, %v370
    %v639 = vpack.c.bf16 %v379, %v375
    %v640 = vpack.c.bf16 %v380, %v376
    %v641 = vpack.c.bf16 %v381, %v377
    %v642 = vpack.c.bf16 %v382, %v378
    %v643 = vpack.c.bf16 %v387, %v383
    %v644 = vpack.c.bf16 %v388, %v384
    %v645 = vpack.c.bf16 %v389, %v385
    %v646 = vpack.c.bf16 %v390, %v386
    %v647 = vpack.c.bf16 %v395, %v391
    %v648 = vpack.c.bf16 %v396, %v392
    %v649 = vpack.c.bf16 %v397, %v393
    %v650 = vpack.c.bf16 %v398, %v394
    %v651 = vpack.c.bf16 %v403, %v399
    %v652 = vpack.c.bf16 %v404, %v400
    %v653 = vpack.c.bf16 %v405, %v401
    %v654 = vpack.c.bf16 %v406, %v402
    %v655 = vpack.c.bf16 %v411, %v407
    %v656 = vpack.c.bf16 %v412, %v408
    %v657 = vpack.c.bf16 %v413, %v409
    %v658 = vpack.c.bf16 %v414, %v410
    %v659 = vpack.c.bf16 %v419, %v415
    %v660 = vpack.c.bf16 %v420, %v416
    %v661 = vpack.c.bf16 %v421, %v417
    %v662 = vpack.c.bf16 %v422, %v418
    %v663 = vpack.c.bf16 %v427, %v423
    %v664 = vpack.c.bf16 %v428, %v424
    %v665 = vpack.c.bf16 %v429, %v425
    %v666 = vpack.c.bf16 %v430, %v426
    %v667 = vpack.c.bf16 %v435, %v431
    %v668 = vpack.c.bf16 %v436, %v432
    %v669 = vpack.c.bf16 %v437, %v433
    %v670 = vpack.c.bf16 %v438, %v434
    %v671 = vpack.c.bf16 %v443, %v439
    %v672 = vpack.c.bf16 %v444, %v440
    %v673 = vpack.c.bf16 %v445, %v441
    %v674 = vpack.c.bf16 %v446, %v442
    %v675 = vpack.c.bf16 %v451, %v447
    %v676 = vpack.c.bf16 %v452, %v448
    %v677 = vpack.c.bf16 %v453, %v449
    %v678 = vpack.c.bf16 %v454, %v450
    %v679 = vpack.c.bf16 %v459, %v455
    %v680 = vpack.c.bf16 %v460, %v456
    %v681 = vpack.c.bf16 %v461, %v457
    %v682 = vpack.c.bf16 %v462, %v458
    %v683 = vpack.c.bf16 %v467, %v463
    %v684 = vpack.c.bf16 %v468, %v464
    %v685 = vpack.c.bf16 %v469, %v465
    %v686 = vpack.c.bf16 %v470, %v466
    %v687 = vpack.c.bf16 %v475, %v471
    %v688 = vpack.c.bf16 %v476, %v472
    %v689 = vpack.c.bf16 %v477, %v473
    %v690 = vpack.c.bf16 %v478, %v474
    %v691 = vpack.c.bf16 %v483, %v479
    %v692 = vpack.c.bf16 %v484, %v480
    %v693 = vpack.c.bf16 %v485, %v481
    %v694 = vpack.c.bf16 %v486, %v482
    %v695 = vpack.c.bf16 %v491, %v487
    %v696 = vpack.c.bf16 %v492, %v488
    %v697 = vpack.c.bf16 %v493, %v489
    %v698 = vpack.c.bf16 %v494, %v490
    %v699 = vpack.c.bf16 %v499, %v495
    %v700 = vpack.c.bf16 %v500, %v496
    %v701 = vpack.c.bf16 %v501, %v497
    %v702 = vpack.c.bf16 %v502, %v498
    %v703 = vpack.c.bf16 %v507, %v503
    %v704 = vpack.c.bf16 %v508, %v504
    %v705 = vpack.c.bf16 %v509, %v505
    %v706 = vpack.c.bf16 %v510, %v506
    %v707 = vld [vmem:[#allocation8] sm:$0xf]
    %v709 = vlaneseq
    %v710 = vshrl.u32 %v709, 7
    %v711 = vsub.s32 0, %v710
    %v712 = vrot.slane %v707, %v711
    %v713 = vlaneseq
    %v714 = vshrl.u32 %v713, 7
    %v715 = vsub.s32 1, %v714
    %v716 = vrot.slane %v707, %v715
    %v717 = vlaneseq
    %v718 = vshrl.u32 %v717, 7
    %v719 = vsub.s32 2, %v718
    %v720 = vrot.slane %v707, %v719
    %v721 = vlaneseq
    %v722 = vshrl.u32 %v721, 7
    %v723 = vsub.s32 3, %v722
    %v724 = vrot.slane %v707, %v723
    %vm729 = vcmask 130048
    %v731 = vsel %vm729, %v118, 0
    %733 = vmatprep.subr.bf16.mxu0 %v512
    %734 = vmatpush1.bf16.msra.mxu0 %v511
    %735 = vmatprep.subr.bf16.mxu0 %v516
    %736 = vmatpush1.bf16.msra.mxu0 %v515
    %737 = vmatprep.subr.bf16.mxu0 %v520
    %738 = vmatpush1.bf16.msra.mxu0 %v519
    %739 = vmatprep.subr.bf16.mxu0 %v524
    %740 = vmatpush1.bf16.msra.mxu0 %v523
    %741 = vmatprep.subr.bf16.mxu0 %v528
    %742 = vmatpush1.bf16.msra.mxu0 %v527
    %743 = vmatprep.subr.bf16.mxu0 %v532
    %744 = vmatpush1.bf16.msra.mxu0 %v531
    %745 = vmatprep.subr.bf16.mxu0 %v536
    %746 = vmatpush1.bf16.msra.mxu0 %v535
    %747 = vmatprep.subr.bf16.mxu0 %v540
    %748 = vmatpush1.bf16.msra.mxu0 %v539
    %749 = vmatprep.subr.bf16.mxu0 %v544
    %750 = vmatpush1.bf16.msra.mxu0 %v543
    %751 = vmatprep.subr.bf16.mxu0 %v548
    %752 = vmatpush1.bf16.msra.mxu0 %v547
    %753 = vmatprep.subr.bf16.mxu0 %v552
    %754 = vmatpush1.bf16.msra.mxu0 %v551
    %755 = vmatprep.subr.bf16.mxu0 %v556
    %756 = vmatpush1.bf16.msra.mxu0 %v555
    %757 = vmatprep.subr.bf16.mxu0 %v560
    %758 = vmatpush1.bf16.msra.mxu0 %v559
    %759 = vmatprep.subr.bf16.mxu0 %v564
    %760 = vmatpush1.bf16.msra.mxu0 %v563
    %761 = vmatprep.subr.bf16.mxu0 %v568
    %762 = vmatpush1.bf16.msra.mxu0 %v567
    %763 = vmatprep.subr.bf16.mxu0 %v572
    %764 = vmatpush1.bf16.msra.mxu0 %v571
    %765 = vmatprep.mubr.bf16.mxu0 %v113
    %766 = vmatmul.mubr.bf16.gmra.mrb[0].mxu0 %v112
    %v767 = vpop.f32.mrb[0].mxu0
    %v768 = vadd.f32 %v712, %v767
    %v769 = vpop.f32.mrb[0].mxu0
    %v770 = vadd.f32 %v716, %v769
    %v771 = vpop.f32.mrb[0].mxu0
    %v772 = vpop.f32.mrb[0].mxu0
    %773 = vdwg.mxu0
    %774 = vmatprep.subr.bf16.mxu0 %v576
    %775 = vmatpush1.bf16.msra.mxu0 %v575
    %776 = vmatprep.subr.bf16.mxu0 %v580
    %777 = vmatpush1.bf16.msra.mxu0 %v579
    %778 = vmatprep.subr.bf16.mxu0 %v584
    %779 = vmatpush1.bf16.msra.mxu0 %v583
    %780 = vmatprep.subr.bf16.mxu0 %v588
    %781 = vmatpush1.bf16.msra.mxu0 %v587
    %782 = vmatprep.subr.bf16.mxu0 %v592
    %783 = vmatpush1.bf16.msra.mxu0 %v591
    %784 = vmatprep.subr.bf16.mxu0 %v596
    %785 = vmatpush1.bf16.msra.mxu0 %v595
    %786 = vmatprep.subr.bf16.mxu0 %v600
    %787 = vmatpush1.bf16.msra.mxu0 %v599
    %788 = vmatprep.subr.bf16.mxu0 %v604
    %789 = vmatpush1.bf16.msra.mxu0 %v603
    %790 = vmatprep.subr.bf16.mxu0 %v608
    %791 = vmatpush1.bf16.msra.mxu0 %v607
    %792 = vmatprep.subr.bf16.mxu0 %v612
    %793 = vmatpush1.bf16.msra.mxu0 %v611
    %794 = vmatprep.subr.bf16.mxu0 %v616
    %795 = vmatpush1.bf16.msra.mxu0 %v615
    %796 = vmatprep.subr.bf16.mxu0 %v620
    %797 = vmatpush1.bf16.msra.mxu0 %v619
    %798 = vmatprep.subr.bf16.mxu0 %v624
    %799 = vmatpush1.bf16.msra.mxu0 %v623
    %800 = vmatprep.subr.bf16.mxu0 %v628
    %801 = vmatpush1.bf16.msra.mxu0 %v627
    %802 = vmatprep.subr.bf16.mxu0 %v632
    %803 = vmatpush1.bf16.msra.mxu0 %v631
    %804 = vmatprep.subr.bf16.mxu0 %v636
    %805 = vmatpush1.bf16.msra.mxu0 %v635
    %806 = vmatprep.mubr.bf16.mxu0 %v115
    %807 = vmatmul.mubr.bf16.gmra.mrb[0].mxu0 %v114
    %v808 = vpop.f32.mrb[0].mxu0
    %v809 = vadd.f32 %v768, %v808
    %v810 = vpop.f32.mrb[0].mxu0
    %v811 = vadd.f32 %v770, %v810
    %v812 = vpop.f32.mrb[0].mxu0
    %v813 = vpop.f32.mrb[0].mxu0
    %814 = vdwg.mxu0
    %815 = vmatprep.subr.bf16.mxu0 %v640
    %816 = vmatpush1.bf16.msra.mxu0 %v639
    %817 = vmatprep.subr.bf16.mxu0 %v644
    %818 = vmatpush1.bf16.msra.mxu0 %v643
    %819 = vmatprep.subr.bf16.mxu0 %v648
    %820 = vmatpush1.bf16.msra.mxu0 %v647
    %821 = vmatprep.subr.bf16.mxu0 %v652
    %822 = vmatpush1.bf16.msra.mxu0 %v651
    %823 = vmatprep.subr.bf16.mxu0 %v656
    %824 = vmatpush1.bf16.msra.mxu0 %v655
    %825 = vmatprep.subr.bf16.mxu0 %v660
    %826 = vmatpush1.bf16.msra.mxu0 %v659
    %827 = vmatprep.subr.bf16.mxu0 %v664
    %828 = vmatpush1.bf16.msra.mxu0 %v663
    %829 = vmatprep.subr.bf16.mxu0 %v668
    %830 = vmatpush1.bf16.msra.mxu0 %v667
    %831 = vmatprep.subr.bf16.mxu0 %v672
    %832 = vmatpush1.bf16.msra.mxu0 %v671
    %833 = vmatprep.subr.bf16.mxu0 %v676
    %834 = vmatpush1.bf16.msra.mxu0 %v675
    %835 = vmatprep.subr.bf16.mxu0 %v680
    %836 = vmatpush1.bf16.msra.mxu0 %v679
    %837 = vmatprep.subr.bf16.mxu0 %v684
    %838 = vmatpush1.bf16.msra.mxu0 %v683
    %839 = vmatprep.subr.bf16.mxu0 %v688
    %840 = vmatpush1.bf16.msra.mxu0 %v687
    %841 = vmatprep.subr.bf16.mxu0 %v692
    %842 = vmatpush1.bf16.msra.mxu0 %v691
    %843 = vmatprep.subr.bf16.mxu0 %v696
    %844 = vmatpush1.bf16.msra.mxu0 %v695
    %845 = vmatprep.subr.bf16.mxu0 %v700
    %846 = vmatpush1.bf16.msra.mxu0 %v699
    %847 = vmatprep.mubr.bf16.mxu0 %v117
    %848 = vmatmul.mubr.bf16.gmra.mrb[0].mxu0 %v116
    %v849 = vpop.f32.mrb[0].mxu0
    %v850 = vadd.f32 %v809, %v849
    %v851 = vpop.f32.mrb[0].mxu0
    %v852 = vadd.f32 %v811, %v851
    %v853 = vpop.f32.mrb[0].mxu0
    %v854 = vpop.f32.mrb[0].mxu0
    %855 = vdwg.mxu0
    %856 = vmatprep.subr.bf16.mxu0 %v704
    %857 = vmatpush1.bf16.msra.mxu0 %v703
    %858 = vmatprep.subr.bf16.mxu0 0
    %859 = vmatpush1.bf16.msra.mxu0 0
    %860 = vmatprep.subr.bf16.mxu0 0
    %861 = vmatpush1.bf16.msra.mxu0 0
    %862 = vmatprep.subr.bf16.mxu0 0
    %863 = vmatpush1.bf16.msra.mxu0 0
    %864 = vmatprep.subr.bf16.mxu0 0
    %865 = vmatpush1.bf16.msra.mxu0 0
    %866 = vmatprep.subr.bf16.mxu0 0
    %867 = vmatpush1.bf16.msra.mxu0 0
    %868 = vmatprep.subr.bf16.mxu0 0
    %869 = vmatpush1.bf16.msra.mxu0 0
    %870 = vmatprep.subr.bf16.mxu0 0
    %871 = vmatpush1.bf16.msra.mxu0 0
    %872 = vmatprep.subr.bf16.mxu0 0
    %873 = vmatpush1.bf16.msra.mxu0 0
    %874 = vmatprep.subr.bf16.mxu0 0
    %875 = vmatpush1.bf16.msra.mxu0 0
    %876 = vmatprep.subr.bf16.mxu0 0
    %877 = vmatpush1.bf16.msra.mxu0 0
    %878 = vmatprep.subr.bf16.mxu0 0
    %879 = vmatpush1.bf16.msra.mxu0 0
    %880 = vmatprep.subr.bf16.mxu0 0
    %881 = vmatpush1.bf16.msra.mxu0 0
    %882 = vmatprep.subr.bf16.mxu0 0
    %883 = vmatpush1.bf16.msra.mxu0 0
    %884 = vmatprep.subr.bf16.mxu0 0
    %885 = vmatpush1.bf16.msra.mxu0 0
    %886 = vmatprep.subr.bf16.mxu0 0
    %887 = vmatpush1.bf16.msra.mxu0 0
    %888 = vmatprep.mubr.bf16.mxu0 0
    %889 = vmatmul.mubr.bf16.gmra.mrb[0].mxu0 %v731
    %v890 = vpop.f32.mrb[0].mxu0
    %v891 = vadd.f32 %v850, %v890
    %v892 = vpop.f32.mrb[0].mxu0
    %v893 = vadd.f32 %v852, %v892
    %v894 = vpop.f32.mrb[0].mxu0
    %v895 = vpop.f32.mrb[0].mxu0
    %896 = vdwg.mxu0
    %897 = vmatprep.subr.bf16.mxu0 %v514
    %898 = vmatpush1.bf16.msra.mxu0 %v513
    %899 = vmatprep.subr.bf16.mxu0 %v518
    %900 = vmatpush1.bf16.msra.mxu0 %v517
    %901 = vmatprep.subr.bf16.mxu0 %v522
    %902 = vmatpush1.bf16.msra.mxu0 %v521
    %903 = vmatprep.subr.bf16.mxu0 %v526
    %904 = vmatpush1.bf16.msra.mxu0 %v525
    %905 = vmatprep.subr.bf16.mxu0 %v530
    %906 = vmatpush1.bf16.msra.mxu0 %v529
    %907 = vmatprep.subr.bf16.mxu0 %v534
    %908 = vmatpush1.bf16.msra.mxu0 %v533
    %909 = vmatprep.subr.bf16.mxu0 %v538
    %910 = vmatpush1.bf16.msra.mxu0 %v537
    %911 = vmatprep.subr.bf16.mxu0 %v542
    %912 = vmatpush1.bf16.msra.mxu0 %v541
    %913 = vmatprep.subr.bf16.mxu0 %v546
    %914 = vmatpush1.bf16.msra.mxu0 %v545
    %915 = vmatprep.subr.bf16.mxu0 %v550
    %916 = vmatpush1.bf16.msra.mxu0 %v549
    %917 = vmatprep.subr.bf16.mxu0 %v554
    %918 = vmatpush1.bf16.msra.mxu0 %v553
    %919 = vmatprep.subr.bf16.mxu0 %v558
    %920 = vmatpush1.bf16.msra.mxu0 %v557
    %921 = vmatprep.subr.bf16.mxu0 %v562
    %922 = vmatpush1.bf16.msra.mxu0 %v561
    %923 = vmatprep.subr.bf16.mxu0 %v566
    %924 = vmatpush1.bf16.msra.mxu0 %v565
    %925 = vmatprep.subr.bf16.mxu0 %v570
    %926 = vmatpush1.bf16.msra.mxu0 %v569
    %927 = vmatprep.subr.bf16.mxu0 %v574
    %928 = vmatpush1.bf16.msra.mxu0 %v573
    %929 = vmatprep.mubr.bf16.mxu0 %v113
    %930 = vmatmul.mubr.bf16.gmra.mrb[0].mxu0 %v112
    %v931 = vpop.f32.mrb[0].mxu0
    %v932 = vadd.f32 %v720, %v931
    %v933 = vpop.f32.mrb[0].mxu0
    %v934 = vadd.f32 %v724, %v933
    %v935 = vpop.f32.mrb[0].mxu0
    %v936 = vpop.f32.mrb[0].mxu0
    %937 = vdwg.mxu0
    %938 = vmatprep.subr.bf16.mxu0 %v578
    %939 = vmatpush1.bf16.msra.mxu0 %v577
    %940 = vmatprep.subr.bf16.mxu0 %v582
    %941 = vmatpush1.bf16.msra.mxu0 %v581
    %942 = vmatprep.subr.bf16.mxu0 %v586
    %943 = vmatpush1.bf16.msra.mxu0 %v585
    %944 = vmatprep.subr.bf16.mxu0 %v590
    %945 = vmatpush1.bf16.msra.mxu0 %v589
    %946 = vmatprep.subr.bf16.mxu0 %v594
    %947 = vmatpush1.bf16.msra.mxu0 %v593
    %948 = vmatprep.subr.bf16.mxu0 %v598
    %949 = vmatpush1.bf16.msra.mxu0 %v597
    %950 = vmatprep.subr.bf16.mxu0 %v602
    %951 = vmatpush1.bf16.msra.mxu0 %v601
    %952 = vmatprep.subr.bf16.mxu0 %v606
    %953 = vmatpush1.bf16.msra.mxu0 %v605
    %954 = vmatprep.subr.bf16.mxu0 %v610
    %955 = vmatpush1.bf16.msra.mxu0 %v609
    %956 = vmatprep.subr.bf16.mxu0 %v614
    %957 = vmatpush1.bf16.msra.mxu0 %v613
    %958 = vmatprep.subr.bf16.mxu0 %v618
    %959 = vmatpush1.bf16.msra.mxu0 %v617
    %960 = vmatprep.subr.bf16.mxu0 %v622
    %961 = vmatpush1.bf16.msra.mxu0 %v621
    %962 = vmatprep.subr.bf16.mxu0 %v626
    %963 = vmatpush1.bf16.msra.mxu0 %v625
    %964 = vmatprep.subr.bf16.mxu0 %v630
    %965 = vmatpush1.bf16.msra.mxu0 %v629
    %966 = vmatprep.subr.bf16.mxu0 %v634
    %967 = vmatpush1.bf16.msra.mxu0 %v633
    %968 = vmatprep.subr.bf16.mxu0 %v638
    %969 = vmatpush1.bf16.msra.mxu0 %v637
    %970 = vmatprep.mubr.bf16.mxu0 %v115
    %971 = vmatmul.mubr.bf16.gmra.mrb[0].mxu0 %v114
    %v972 = vpop.f32.mrb[0].mxu0
    %v973 = vadd.f32 %v932, %v972
    %v974 = vpop.f32.mrb[0].mxu0
    %v975 = vadd.f32 %v934, %v974
    %v976 = vpop.f32.mrb[0].mxu0
    %v977 = vpop.f32.mrb[0].mxu0
    %978 = vdwg.mxu0
    %979 = vmatprep.subr.bf16.mxu0 %v642
    %980 = vmatpush1.bf16.msra.mxu0 %v641
    %981 = vmatprep.subr.bf16.mxu0 %v646
    %982 = vmatpush1.bf16.msra.mxu0 %v645
    %983 = vmatprep.subr.bf16.mxu0 %v650
    %984 = vmatpush1.bf16.msra.mxu0 %v649
    %985 = vmatprep.subr.bf16.mxu0 %v654
    %986 = vmatpush1.bf16.msra.mxu0 %v653
    %987 = vmatprep.subr.bf16.mxu0 %v658
    %988 = vmatpush1.bf16.msra.mxu0 %v657
    %989 = vmatprep.subr.bf16.mxu0 %v662
    %990 = vmatpush1.bf16.msra.mxu0 %v661
    %991 = vmatprep.subr.bf16.mxu0 %v666
    %992 = vmatpush1.bf16.msra.mxu0 %v665
    %993 = vmatprep.subr.bf16.mxu0 %v670
    %994 = vmatpush1.bf16.msra.mxu0 %v669
    %995 = vmatprep.subr.bf16.mxu0 %v674
    %996 = vmatpush1.bf16.msra.mxu0 %v673
    %997 = vmatprep.subr.bf16.mxu0 %v678
    %998 = vmatpush1.bf16.msra.mxu0 %v677
    %999 = vmatprep.subr.bf16.mxu0 %v682
    %1000 = vmatpush1.bf16.msra.mxu0 %v681
    %1001 = vmatprep.subr.bf16.mxu0 %v686
    %1002 = vmatpush1.bf16.msra.mxu0 %v685
    %1003 = vmatprep.subr.bf16.mxu0 %v690
    %1004 = vmatpush1.bf16.msra.mxu0 %v689
    %1005 = vmatprep.subr.bf16.mxu0 %v694
    %1006 = vmatpush1.bf16.msra.mxu0 %v693
    %1007 = vmatprep.subr.bf16.mxu0 %v698
    %1008 = vmatpush1.bf16.msra.mxu0 %v697
    %1009 = vmatprep.subr.bf16.mxu0 %v702
    %1010 = vmatpush1.bf16.msra.mxu0 %v701
    %1011 = vmatprep.mubr.bf16.mxu0 %v117
    %1012 = vmatmul.mubr.bf16.gmra.mrb[0].mxu0 %v116
    %v1013 = vpop.f32.mrb[0].mxu0
    %v1014 = vadd.f32 %v973, %v1013
    %v1015 = vpop.f32.mrb[0].mxu0
    %v1016 = vadd.f32 %v975, %v1015
    %v1017 = vpop.f32.mrb[0].mxu0
    %v1018 = vpop.f32.mrb[0].mxu0
    %1019 = vdwg.mxu0
    %1020 = vmatprep.subr.bf16.mxu0 %v706
    %1021 = vmatpush1.bf16.msra.mxu0 %v705
    %1022 = vmatprep.subr.bf16.mxu0 0
    %1023 = vmatpush1.bf16.msra.mxu0 0
    %1024 = vmatprep.subr.bf16.mxu0 0
    %1025 = vmatpush1.bf16.msra.mxu0 0
    %1026 = vmatprep.subr.bf16.mxu0 0
    %1027 = vmatpush1.bf16.msra.mxu0 0
    %1028 = vmatprep.subr.bf16.mxu0 0
    %1029 = vmatpush1.bf16.msra.mxu0 0
    %1030 = vmatprep.subr.bf16.mxu0 0
    %1031 = vmatpush1.bf16.msra.mxu0 0
    %1032 = vmatprep.subr.bf16.mxu0 0
    %1033 = vmatpush1.bf16.msra.mxu0 0
    %1034 = vmatprep.subr.bf16.mxu0 0
    %1035 = vmatpush1.bf16.msra.mxu0 0
    %1036 = vmatprep.subr.bf16.mxu0 0
    %1037 = vmatpush1.bf16.msra.mxu0 0
    %1038 = vmatprep.subr.bf16.mxu0 0
    %1039 = vmatpush1.bf16.msra.mxu0 0
    %1040 = vmatprep.subr.bf16.mxu0 0
    %1041 = vmatpush1.bf16.msra.mxu0 0
    %1042 = vmatprep.subr.bf16.mxu0 0
    %1043 = vmatpush1.bf16.msra.mxu0 0
    %1044 = vmatprep.subr.bf16.mxu0 0
    %1045 = vmatpush1.bf16.msra.mxu0 0
    %1046 = vmatprep.subr.bf16.mxu0 0
    %1047 = vmatpush1.bf16.msra.mxu0 0
    %1048 = vmatprep.subr.bf16.mxu0 0
    %1049 = vmatpush1.bf16.msra.mxu0 0
    %1050 = vmatprep.subr.bf16.mxu0 0
    %1051 = vmatpush1.bf16.msra.mxu0 0
    %1052 = vmatprep.mubr.bf16.mxu0 0
    %1053 = vmatmul.mubr.bf16.gmra.mrb[0].mxu0 %v731
    %v1054 = vpop.f32.mrb[0].mxu0
    %v1055 = vadd.f32 %v1014, %v1054
    %v1056 = vpop.f32.mrb[0].mxu0
    %v1057 = vadd.f32 %v1016, %v1056
    %v1058 = vpop.f32.mrb[0].mxu0
    %v1059 = vpop.f32.mrb[0].mxu0
    %1060 = vdwg.mxu0
    %v1061 = vmul.f32 %v891, 0.2
    %v1062 = vmul.f32 %v893, 0.2
    %v1063 = vmul.f32 %v1055, 0.2
    %v1064 = vmul.f32 %v1057, 0.2
    %v1065 = vmax.f32 %v891, %v1061
    %v1066 = vmax.f32 %v893, %v1062
    %v1067 = vmax.f32 %v1055, %v1063
    %v1068 = vmax.f32 %v1057, %v1064
    %v1069 = vpack.c.bf16 %v1065, %v1065
    %v1070 = vpack.c.bf16 %v1066, %v1066
    %v1071 = vpack.c.bf16 %v1067, %v1067
    %v1072 = vpack.c.bf16 %v1068, %v1068
    %v1073 = vld [vmem:[#allocation9] sm:$0xff]
    %v1074 = vld [vmem:[#allocation9 + $0x8] sm:$0xff]
    %v1075 = vld [vmem:[#allocation9 + $0x10] sm:$0xff]
    %v1076 = vld [vmem:[#allocation9 + $0x18] sm:$0xff]
    %v1077 = vld [vmem:[#allocation9 + $0x20] sm:$0xff]
    %v1078 = vld [vmem:[#allocation9 + $0x28] sm:$0xff]
    %v1079 = vld [vmem:[#allocation9 + $0x30] sm:$0xff]
    %v1080 = vld [vmem:[#allocation9 + $0x38] sm:$0xff]
    %v1081 = vld [vmem:[#allocation9 + $0x40] sm:$0xff]
    %v1082 = vld [vmem:[#allocation9 + $0x48] sm:$0xff]
    %v1083 = vld [vmem:[#allocation9 + $0x50] sm:$0xff]
    %v1084 = vld [vmem:[#allocation9 + $0x58] sm:$0xff]
    %v1085 = vld [vmem:[#allocation9 + $0x60] sm:$0xff]
    %v1086 = vld [vmem:[#allocation9 + $0x68] sm:$0xff]
    %v1087 = vld [vmem:[#allocation9 + $0x70] sm:$0xff]
    %v1088 = vld [vmem:[#allocation9 + $0x78] sm:$0xff]
    %v1089 = vld [vmem:[#allocation9 + $0x80] sm:$0xff]
    %v1090 = vld [vmem:[#allocation9 + $0x88] sm:$0xff]
    %v1091 = vld [vmem:[#allocation9 + $0x90] sm:$0xff]
    %v1092 = vld [vmem:[#allocation9 + $0x98] sm:$0xff]
    %v1093 = vld [vmem:[#allocation9 + $0xa0] sm:$0xff]
    %v1094 = vld [vmem:[#allocation9 + $0xa8] sm:$0xff]
    %v1095 = vld [vmem:[#allocation9 + $0xb0] sm:$0xff]
    %v1096 = vld [vmem:[#allocation9 + $0xb8] sm:$0xff]
    %v1097 = vld [vmem:[#allocation9 + $0xc0] sm:$0xff]
    %v1098 = vld [vmem:[#allocation9 + $0xc8] sm:$0xff]
    %v1099 = vld [vmem:[#allocation9 + $0xd0] sm:$0xff]
    %v1100 = vld [vmem:[#allocation9 + $0xd8] sm:$0xff]
    %v1101 = vld [vmem:[#allocation9 + $0xe0] sm:$0xff]
    %v1102 = vld [vmem:[#allocation9 + $0xe8] sm:$0xff]
    %v1103 = vld [vmem:[#allocation9 + $0xf0] sm:$0xff]
    %v1104 = vld [vmem:[#allocation9 + $0xf8] sm:$0xff]
    %v1105 = vld [vmem:[#allocation9 + $0x100] sm:$0xff]
    %v1106 = vld [vmem:[#allocation9 + $0x108] sm:$0xff]
    %v1107 = vld [vmem:[#allocation9 + $0x110] sm:$0xff]
    %v1108 = vld [vmem:[#allocation9 + $0x118] sm:$0xff]
    %v1109 = vld [vmem:[#allocation9 + $0x120] sm:$0xff]
    %v1110 = vld [vmem:[#allocation9 + $0x128] sm:$0xff]
    %v1111 = vld [vmem:[#allocation9 + $0x130] sm:$0xff]
    %v1112 = vld [vmem:[#allocation9 + $0x138] sm:$0xff]
    %v1113 = vld [vmem:[#allocation9 + $0x140] sm:$0xff]
    %v1114 = vld [vmem:[#allocation9 + $0x148] sm:$0xff]
    %v1115 = vld [vmem:[#allocation9 + $0x150] sm:$0xff]
    %v1116 = vld [vmem:[#allocation9 + $0x158] sm:$0xff]
    %v1117 = vld [vmem:[#allocation9 + $0x160] sm:$0xff]
    %v1118 = vld [vmem:[#allocation9 + $0x168] sm:$0xff]
    %v1119 = vld [vmem:[#allocation9 + $0x170] sm:$0xff]
    %v1120 = vld [vmem:[#allocation9 + $0x178] sm:$0xff]
    %v1121 = vld [vmem:[#allocation9 + $0x180] sm:$0xff]
    %v1122 = vld [vmem:[#allocation9 + $0x188] sm:$0xff]
    %v1123 = vld [vmem:[#allocation9 + $0x190] sm:$0xff]
    %v1124 = vld [vmem:[#allocation9 + $0x198] sm:$0xff]
    %v1125 = vld [vmem:[#allocation9 + $0x1a0] sm:$0xff]
    %v1126 = vld [vmem:[#allocation9 + $0x1a8] sm:$0xff]
    %v1127 = vld [vmem:[#allocation9 + $0x1b0] sm:$0xff]
    %v1128 = vld [vmem:[#allocation9 + $0x1b8] sm:$0xff]
    %v1129 = vld [vmem:[#allocation9 + $0x1c0] sm:$0xff]
    %v1130 = vld [vmem:[#allocation9 + $0x1c8] sm:$0xff]
    %v1131 = vld [vmem:[#allocation9 + $0x1d0] sm:$0xff]
    %v1132 = vld [vmem:[#allocation9 + $0x1d8] sm:$0xff]
    %v1133 = vld [vmem:[#allocation9 + $0x1e0] sm:$0xff]
    %v1134 = vld [vmem:[#allocation9 + $0x1e8] sm:$0xff]
    %v1135 = vld [vmem:[#allocation9 + $0x1f0] sm:$0xff]
    %v1136 = vld [vmem:[#allocation9 + $0x1f8] sm:$0xff]
    %v1137 = vld [vmem:[#allocation9 + $0x200] sm:$0xff]
    %v1138 = vld [vmem:[#allocation9 + $0x208] sm:$0xff]
    %v1139 = vld [vmem:[#allocation9 + $0x210] sm:$0xff]
    %v1140 = vld [vmem:[#allocation9 + $0x218] sm:$0xff]
    %v1141 = vld [vmem:[#allocation9 + $0x220] sm:$0xff]
    %v1142 = vld [vmem:[#allocation9 + $0x228] sm:$0xff]
    %v1143 = vld [vmem:[#allocation9 + $0x230] sm:$0xff]
    %v1144 = vld [vmem:[#allocation9 + $0x238] sm:$0xff]
    %v1145 = vld [vmem:[#allocation9 + $0x240] sm:$0xff]
    %v1146 = vld [vmem:[#allocation9 + $0x248] sm:$0xff]
    %v1147 = vld [vmem:[#allocation9 + $0x250] sm:$0xff]
    %v1148 = vld [vmem:[#allocation9 + $0x258] sm:$0xff]
    %v1149 = vld [vmem:[#allocation9 + $0x260] sm:$0xff]
    %v1150 = vld [vmem:[#allocation9 + $0x268] sm:$0xff]
    %v1151 = vld [vmem:[#allocation9 + $0x270] sm:$0xff]
    %v1152 = vld [vmem:[#allocation9 + $0x278] sm:$0xff]
    %v1153 = vld [vmem:[#allocation9 + $0x280] sm:$0xff]
    %v1154 = vld [vmem:[#allocation9 + $0x288] sm:$0xff]
    %v1155 = vld [vmem:[#allocation9 + $0x290] sm:$0xff]
    %v1156 = vld [vmem:[#allocation9 + $0x298] sm:$0xff]
    %v1157 = vld [vmem:[#allocation9 + $0x2a0] sm:$0xff]
    %v1158 = vld [vmem:[#allocation9 + $0x2a8] sm:$0xff]
    %v1159 = vld [vmem:[#allocation9 + $0x2b0] sm:$0xff]
    %v1160 = vld [vmem:[#allocation9 + $0x2b8] sm:$0xff]
    %v1161 = vld [vmem:[#allocation9 + $0x2c0] sm:$0xff]
    %v1162 = vld [vmem:[#allocation9 + $0x2c8] sm:$0xff]
    %v1163 = vld [vmem:[#allocation9 + $0x2d0] sm:$0xff]
    %v1164 = vld [vmem:[#allocation9 + $0x2d8] sm:$0xff]
    %v1165 = vld [vmem:[#allocation9 + $0x2e0] sm:$0xff]
    %v1166 = vld [vmem:[#allocation9 + $0x2e8] sm:$0xff]
    %v1167 = vld [vmem:[#allocation9 + $0x2f0] sm:$0xff]
    %v1168 = vld [vmem:[#allocation9 + $0x2f8] sm:$0xff]
    %v1169 = vld [vmem:[#allocation9 + $0x300] sm:$0xff]
    %v1170 = vld [vmem:[#allocation9 + $0x308] sm:$0xff]
    %v1171 = vld [vmem:[#allocation9 + $0x310] sm:$0xff]
    %v1172 = vld [vmem:[#allocation9 + $0x318] sm:$0xff]
    %v1173 = vld [vmem:[#allocation9 + $0x320] sm:$0xff]
    %v1174 = vld [vmem:[#allocation9 + $0x328] sm:$0xff]
    %v1175 = vld [vmem:[#allocation9 + $0x330] sm:$0xff]
    %v1176 = vld [vmem:[#allocation9 + $0x338] sm:$0xff]
    %v1177 = vld [vmem:[#allocation9 + $0x340] sm:$0xff]
    %v1178 = vld [vmem:[#allocation9 + $0x348] sm:$0xff]
    %v1179 = vld [vmem:[#allocation9 + $0x350] sm:$0xff]
    %v1180 = vld [vmem:[#allocation9 + $0x358] sm:$0xff]
    %v1181 = vld [vmem:[#allocation9 + $0x360] sm:$0xff]
    %v1182 = vld [vmem:[#allocation9 + $0x368] sm:$0xff]
    %v1183 = vld [vmem:[#allocation9 + $0x370] sm:$0xff]
    %v1184 = vld [vmem:[#allocation9 + $0x378] sm:$0xff]
    %v1185 = vld [vmem:[#allocation9 + $0x380] sm:$0xff]
    %v1186 = vld [vmem:[#allocation9 + $0x388] sm:$0xff]
    %v1187 = vld [vmem:[#allocation9 + $0x390] sm:$0xff]
    %v1188 = vld [vmem:[#allocation9 + $0x398] sm:$0xff]
    %v1189 = vld [vmem:[#allocation9 + $0x3a0] sm:$0xff]
    %v1190 = vld [vmem:[#allocation9 + $0x3a8] sm:$0xff]
    %v1191 = vld [vmem:[#allocation9 + $0x3b0] sm:$0xff]
    %v1192 = vld [vmem:[#allocation9 + $0x3b8] sm:$0xff]
    %v1193 = vld [vmem:[#allocation9 + $0x3c0] sm:$0xff]
    %v1194 = vld [vmem:[#allocation9 + $0x3c8] sm:$0xff]
    %v1195 = vld [vmem:[#allocation9 + $0x3d0] sm:$0xff]
    %v1196 = vld [vmem:[#allocation9 + $0x3d8] sm:$0xff]
    %v1197 = vld [vmem:[#allocation9 + $0x3e0] sm:$0xff]
    %v1198 = vld [vmem:[#allocation9 + $0x3e8] sm:$0xff]
    %v1199 = vld [vmem:[#allocation9 + $0x3f0] sm:$0xff]
    %v1200 = vld [vmem:[#allocation9 + $0x3f8] sm:$0xff]
    %v1201 = vpack.c.bf16 %v1075, %v1073
    %v1202 = vpack.c.bf16 %v1076, %v1074
    %v1203 = vpack.c.bf16 %v1079, %v1077
    %v1204 = vpack.c.bf16 %v1080, %v1078
    %v1205 = vpack.c.bf16 %v1083, %v1081
    %v1206 = vpack.c.bf16 %v1084, %v1082
    %v1207 = vpack.c.bf16 %v1087, %v1085
    %v1208 = vpack.c.bf16 %v1088, %v1086
    %v1209 = vpack.c.bf16 %v1091, %v1089
    %v1210 = vpack.c.bf16 %v1092, %v1090
    %v1211 = vpack.c.bf16 %v1095, %v1093
    %v1212 = vpack.c.bf16 %v1096, %v1094
    %v1213 = vpack.c.bf16 %v1099, %v1097
    %v1214 = vpack.c.bf16 %v1100, %v1098
    %v1215 = vpack.c.bf16 %v1103, %v1101
    %v1216 = vpack.c.bf16 %v1104, %v1102
    %v1217 = vpack.c.bf16 %v1107, %v1105
    %v1218 = vpack.c.bf16 %v1108, %v1106
    %v1219 = vpack.c.bf16 %v1111, %v1109
    %v1220 = vpack.c.bf16 %v1112, %v1110
    %v1221 = vpack.c.bf16 %v1115, %v1113
    %v1222 = vpack.c.bf16 %v1116, %v1114
    %v1223 = vpack.c.bf16 %v1119, %v1117
    %v1224 = vpack.c.bf16 %v1120, %v1118
    %v1225 = vpack.c.bf16 %v1123, %v1121
    %v1226 = vpack.c.bf16 %v1124, %v1122
    %v1227 = vpack.c.bf16 %v1127, %v1125
    %v1228 = vpack.c.bf16 %v1128, %v1126
    %v1229 = vpack.c.bf16 %v1131, %v1129
    %v1230 = vpack.c.bf16 %v1132, %v1130
    %v1231 = vpack.c.bf16 %v1135, %v1133
    %v1232 = vpack.c.bf16 %v1136, %v1134
    %v1233 = vpack.c.bf16 %v1139, %v1137
    %v1234 = vpack.c.bf16 %v1140, %v1138
    %v1235 = vpack.c.bf16 %v1143, %v1141
    %v1236 = vpack.c.bf16 %v1144, %v1142
    %v1237 = vpack.c.bf16 %v1147, %v1145
    %v1238 = vpack.c.bf16 %v1148, %v1146
    %v1239 = vpack.c.bf16 %v1151, %v1149
    %v1240 = vpack.c.bf16 %v1152, %v1150
    %v1241 = vpack.c.bf16 %v1155, %v1153
    %v1242 = vpack.c.bf16 %v1156, %v1154
    %v1243 = vpack.c.bf16 %v1159, %v1157
    %v1244 = vpack.c.bf16 %v1160, %v1158
    %v1245 = vpack.c.bf16 %v1163, %v1161
    %v1246 = vpack.c.bf16 %v1164, %v1162
    %v1247 = vpack.c.bf16 %v1167, %v1165
    %v1248 = vpack.c.bf16 %v1168, %v1166
    %v1249 = vpack.c.bf16 %v1171, %v1169
    %v1250 = vpack.c.bf16 %v1172, %v1170
    %v1251 = vpack.c.bf16 %v1175, %v1173
    %v1252 = vpack.c.bf16 %v1176, %v1174
    %v1253 = vpack.c.bf16 %v1179, %v1177
    %v1254 = vpack.c.bf16 %v1180, %v1178
    %v1255 = vpack.c.bf16 %v1183, %v1181
    %v1256 = vpack.c.bf16 %v1184, %v1182
    %v1257 = vpack.c.bf16 %v1187, %v1185
    %v1258 = vpack.c.bf16 %v1188, %v1186
    %v1259 = vpack.c.bf16 %v1191, %v1189
    %v1260 = vpack.c.bf16 %v1192, %v1190
    %v1261 = vpack.c.bf16 %v1195, %v1193
    %v1262 = vpack.c.bf16 %v1196, %v1194
    %v1263 = vpack.c.bf16 %v1199, %v1197
    %v1264 = vpack.c.bf16 %v1200, %v1198
    %v1265 = vld [vmem:[#allocation11] sm:$0x3]
    %v1267 = vlaneseq
    %v1268 = vshrl.u32 %v1267, 7
    %v1269 = vsub.s32 0, %v1268
    %v1270 = vrot.slane %v1265, %v1269
    %v1271 = vlaneseq
    %v1272 = vshrl.u32 %v1271, 7
    %v1273 = vsub.s32 1, %v1272
    %v1274 = vrot.slane %v1265, %v1273
    %1277 = vmatprep.subr.bf16.mxu0 %v1202
    %1278 = vmatpush1.bf16.msra.mxu0 %v1201
    %1279 = vmatprep.subr.bf16.mxu0 %v1204
    %1280 = vmatpush1.bf16.msra.mxu0 %v1203
    %1281 = vmatprep.subr.bf16.mxu0 %v1206
    %1282 = vmatpush1.bf16.msra.mxu0 %v1205
    %1283 = vmatprep.subr.bf16.mxu0 %v1208
    %1284 = vmatpush1.bf16.msra.mxu0 %v1207
    %1285 = vmatprep.subr.bf16.mxu0 %v1210
    %1286 = vmatpush1.bf16.msra.mxu0 %v1209
    %1287 = vmatprep.subr.bf16.mxu0 %v1212
    %1288 = vmatpush1.bf16.msra.mxu0 %v1211
    %1289 = vmatprep.subr.bf16.mxu0 %v1214
    %1290 = vmatpush1.bf16.msra.mxu0 %v1213
    %1291 = vmatprep.subr.bf16.mxu0 %v1216
    %1292 = vmatpush1.bf16.msra.mxu0 %v1215
    %1293 = vmatprep.subr.bf16.mxu0 %v1218
    %1294 = vmatpush1.bf16.msra.mxu0 %v1217
    %1295 = vmatprep.subr.bf16.mxu0 %v1220
    %1296 = vmatpush1.bf16.msra.mxu0 %v1219
    %1297 = vmatprep.subr.bf16.mxu0 %v1222
    %1298 = vmatpush1.bf16.msra.mxu0 %v1221
    %1299 = vmatprep.subr.bf16.mxu0 %v1224
    %1300 = vmatpush1.bf16.msra.mxu0 %v1223
    %1301 = vmatprep.subr.bf16.mxu0 %v1226
    %1302 = vmatpush1.bf16.msra.mxu0 %v1225
    %1303 = vmatprep.subr.bf16.mxu0 %v1228
    %1304 = vmatpush1.bf16.msra.mxu0 %v1227
    %1305 = vmatprep.subr.bf16.mxu0 %v1230
    %1306 = vmatpush1.bf16.msra.mxu0 %v1229
    %1307 = vmatprep.subr.bf16.mxu0 %v1232
    %1308 = vmatpush1.bf16.msra.mxu0 %v1231
    %1309 = vmatprep.mubr.bf16.mxu0 %v1070
    %1310 = vmatmul.mubr.bf16.gmra.mrb[0].mxu0 %v1069
    %v1311 = vpop.f32.mrb[0].mxu0
    %v1312 = vadd.f32 %v1270, %v1311
    %v1313 = vpop.f32.mrb[0].mxu0
    %v1314 = vadd.f32 %v1274, %v1313
    %v1315 = vpop.f32.mrb[0].mxu0
    %v1316 = vpop.f32.mrb[0].mxu0
    %1317 = vdwg.mxu0
    %1318 = vmatprep.subr.bf16.mxu0 %v1234
    %1319 = vmatpush1.bf16.msra.mxu0 %v1233
    %1320 = vmatprep.subr.bf16.mxu0 %v1236
    %1321 = vmatpush1.bf16.msra.mxu0 %v1235
    %1322 = vmatprep.subr.bf16.mxu0 %v1238
    %1323 = vmatpush1.bf16.msra.mxu0 %v1237
    %1324 = vmatprep.subr.bf16.mxu0 %v1240
    %1325 = vmatpush1.bf16.msra.mxu0 %v1239
    %1326 = vmatprep.subr.bf16.mxu0 %v1242
    %1327 = vmatpush1.bf16.msra.mxu0 %v1241
    %1328 = vmatprep.subr.bf16.mxu0 %v1244
    %1329 = vmatpush1.bf16.msra.mxu0 %v1243
    %1330 = vmatprep.subr.bf16.mxu0 %v1246
    %1331 = vmatpush1.bf16.msra.mxu0 %v1245
    %1332 = vmatprep.subr.bf16.mxu0 %v1248
    %1333 = vmatpush1.bf16.msra.mxu0 %v1247
    %1334 = vmatprep.subr.bf16.mxu0 %v1250
    %1335 = vmatpush1.bf16.msra.mxu0 %v1249
    %1336 = vmatprep.subr.bf16.mxu0 %v1252
    %1337 = vmatpush1.bf16.msra.mxu0 %v1251
    %1338 = vmatprep.subr.bf16.mxu0 %v1254
    %1339 = vmatpush1.bf16.msra.mxu0 %v1253
    %1340 = vmatprep.subr.bf16.mxu0 %v1256
    %1341 = vmatpush1.bf16.msra.mxu0 %v1255
    %1342 = vmatprep.subr.bf16.mxu0 %v1258
    %1343 = vmatpush1.bf16.msra.mxu0 %v1257
    %1344 = vmatprep.subr.bf16.mxu0 %v1260
    %1345 = vmatpush1.bf16.msra.mxu0 %v1259
    %1346 = vmatprep.subr.bf16.mxu0 %v1262
    %1347 = vmatpush1.bf16.msra.mxu0 %v1261
    %1348 = vmatprep.subr.bf16.mxu0 %v1264
    %1349 = vmatpush1.bf16.msra.mxu0 %v1263
    %1350 = vmatprep.mubr.bf16.mxu0 %v1072
    %1351 = vmatmul.mubr.bf16.gmra.mrb[0].mxu0 %v1071
    %v1352 = vpop.f32.mrb[0].mxu0
    %v1353 = vadd.f32 %v1312, %v1352
    %v1354 = vpop.f32.mrb[0].mxu0
    %v1355 = vadd.f32 %v1314, %v1354
    %v1356 = vpop.f32.mrb[0].mxu0
    %v1357 = vpop.f32.mrb[0].mxu0
    %1358 = vdwg.mxu0
    %v1359 = vmul.f32 %v1353, 0.2
    %v1360 = vmul.f32 %v1355, 0.2
    %v1361 = vmax.f32 %v1353, %v1359
    %v1362 = vmax.f32 %v1355, %v1360
    %v1363 = vpack.c.bf16 %v1361, %v1361
    %v1364 = vpack.c.bf16 %v1362, %v1362
    %v1365 = vld [vmem:[#allocation12] sm:$0xff]
    %v1366 = vld [vmem:[#allocation12 + $0x8] sm:$0xff]
    %v1367 = vld [vmem:[#allocation12 + $0x10] sm:$0xff]
    %v1368 = vld [vmem:[#allocation12 + $0x18] sm:$0xff]
    %v1369 = vld [vmem:[#allocation12 + $0x20] sm:$0xff]
    %v1370 = vld [vmem:[#allocation12 + $0x28] sm:$0xff]
    %v1371 = vld [vmem:[#allocation12 + $0x30] sm:$0xff]
    %v1372 = vld [vmem:[#allocation12 + $0x38] sm:$0xff]
    %v1373 = vld [vmem:[#allocation12 + $0x40] sm:$0xff]
    %v1374 = vld [vmem:[#allocation12 + $0x48] sm:$0xff]
    %v1375 = vld [vmem:[#allocation12 + $0x50] sm:$0xff]
    %v1376 = vld [vmem:[#allocation12 + $0x58] sm:$0xff]
    %v1377 = vld [vmem:[#allocation12 + $0x60] sm:$0xff]
    %v1378 = vld [vmem:[#allocation12 + $0x68] sm:$0xff]
    %v1379 = vld [vmem:[#allocation12 + $0x70] sm:$0xff]
    %v1380 = vld [vmem:[#allocation12 + $0x78] sm:$0xff]
    %v1381 = vld [vmem:[#allocation12 + $0x80] sm:$0xff]
    %v1382 = vld [vmem:[#allocation12 + $0x88] sm:$0xff]
    %v1383 = vld [vmem:[#allocation12 + $0x90] sm:$0xff]
    %v1384 = vld [vmem:[#allocation12 + $0x98] sm:$0xff]
    %v1385 = vld [vmem:[#allocation12 + $0xa0] sm:$0xff]
    %v1386 = vld [vmem:[#allocation12 + $0xa8] sm:$0xff]
    %v1387 = vld [vmem:[#allocation12 + $0xb0] sm:$0xff]
    %v1388 = vld [vmem:[#allocation12 + $0xb8] sm:$0xff]
    %v1389 = vld [vmem:[#allocation12 + $0xc0] sm:$0xff]
    %v1390 = vld [vmem:[#allocation12 + $0xc8] sm:$0xff]
    %v1391 = vld [vmem:[#allocation12 + $0xd0] sm:$0xff]
    %v1392 = vld [vmem:[#allocation12 + $0xd8] sm:$0xff]
    %v1393 = vld [vmem:[#allocation12 + $0xe0] sm:$0xff]
    %v1394 = vld [vmem:[#allocation12 + $0xe8] sm:$0xff]
    %v1395 = vld [vmem:[#allocation12 + $0xf0] sm:$0xff]
    %v1396 = vld [vmem:[#allocation12 + $0xf8] sm:$0xff]
    %v1397 = vpack.c.bf16 %v1366, %v1365
    %v1398 = vpack.c.bf16 %v1368, %v1367
    %v1399 = vpack.c.bf16 %v1370, %v1369
    %v1400 = vpack.c.bf16 %v1372, %v1371
    %v1401 = vpack.c.bf16 %v1374, %v1373
    %v1402 = vpack.c.bf16 %v1376, %v1375
    %v1403 = vpack.c.bf16 %v1378, %v1377
    %v1404 = vpack.c.bf16 %v1380, %v1379
    %v1405 = vpack.c.bf16 %v1382, %v1381
    %v1406 = vpack.c.bf16 %v1384, %v1383
    %v1407 = vpack.c.bf16 %v1386, %v1385
    %v1408 = vpack.c.bf16 %v1388, %v1387
    %v1409 = vpack.c.bf16 %v1390, %v1389
    %v1410 = vpack.c.bf16 %v1392, %v1391
    %v1411 = vpack.c.bf16 %v1394, %v1393
    %v1412 = vpack.c.bf16 %v1396, %v1395
    %1413 = vmatprep.subr.bf16.mxu0 0
    %1414 = vmatpush1.bf16.msra.mxu0 %v1397
    %1415 = vmatprep.subr.bf16.mxu0 0
    %1416 = vmatpush1.bf16.msra.mxu0 %v1398
    %1417 = vmatprep.subr.bf16.mxu0 0
    %1418 = vmatpush1.bf16.msra.mxu0 %v1399
    %1419 = vmatprep.subr.bf16.mxu0 0
    %1420 = vmatpush1.bf16.msra.mxu0 %v1400
    %1421 = vmatprep.subr.bf16.mxu0 0
    %1422 = vmatpush1.bf16.msra.mxu0 %v1401
    %1423 = vmatprep.subr.bf16.mxu0 0
    %1424 = vmatpush1.bf16.msra.mxu0 %v1402
    %1425 = vmatprep.subr.bf16.mxu0 0
    %1426 = vmatpush1.bf16.msra.mxu0 %v1403
    %1427 = vmatprep.subr.bf16.mxu0 0
    %1428 = vmatpush1.bf16.msra.mxu0 %v1404
    %1429 = vmatprep.subr.bf16.mxu0 0
    %1430 = vmatpush1.bf16.msra.mxu0 %v1405
    %1431 = vmatprep.subr.bf16.mxu0 0
    %1432 = vmatpush1.bf16.msra.mxu0 %v1406
    %1433 = vmatprep.subr.bf16.mxu0 0
    %1434 = vmatpush1.bf16.msra.mxu0 %v1407
    %1435 = vmatprep.subr.bf16.mxu0 0
    %1436 = vmatpush1.bf16.msra.mxu0 %v1408
    %1437 = vmatprep.subr.bf16.mxu0 0
    %1438 = vmatpush1.bf16.msra.mxu0 %v1409
    %1439 = vmatprep.subr.bf16.mxu0 0
    %1440 = vmatpush1.bf16.msra.mxu0 %v1410
    %1441 = vmatprep.subr.bf16.mxu0 0
    %1442 = vmatpush1.bf16.msra.mxu0 %v1411
    %1443 = vmatprep.subr.bf16.mxu0 0
    %1444 = vmatpush1.bf16.msra.mxu0 %v1412
    %1445 = vmatprep.mubr.bf16.mxu0 %v1364
    %1446 = vmatmul.mubr.bf16.gmra.mrb[0].mxu0 %v1363
    %v1447 = vpop.f32.mrb[0].mxu0
    %v1448 = vadd.f32 0.0, %v1447
    %v1449 = vpop.f32.mrb[0].mxu0
    %v1450 = vpop.f32.mrb[0].mxu0
    %v1451 = vpop.f32.mrb[0].mxu0
    %1452 = vdwg.mxu0
    %s1453 = sld [smem:[#allocation2]]
    %v1454 = vstv %s1453
    %v1455 = vadd.f32 %v1448, %v1454
    %v1456 = vxor.u32 %v1455, 2147483648
    %v1457 = vmul.f32 %v1456, 1.442695
    %v1458 = vpow.pop %v1457
    %v1459 = vadd.f32 %v1458, 1.0
    %v1460 = vrcp.pop %v1459
    %v1461 = vmul.f32 1.0, %v1460
    %v1462 = vpack.c.bf16 %v1461, %v1461
    %1464 = vset.pattern.permute.xlu0 0
    %1465 = vperm.xlu0 %1464, %v1462
    %v1466 = vpop.permute.xlu0 %1465
    %1468 = vst [vmem:[#allocation14] sm:$0xf] %v1466
    // Predicated region
    $region54: #{tpu_custom_call.1} parent=1 // pred_check
      _
    $region55: #{tpu_custom_call.1} parent=1 // pred_check_branch
      %1470 = sbr.rel (0) target = $region57
    $region56: #{tpu_custom_call.1} parent=1 // pred_region
      %s1472 = ssub.s32 64, 64
      %1473 = vsyncadd [#allocation5], %s1472
      %s1475 = sshll.u32 [#allocation14], 4
      %s1476 = int_to_ptr.vmem [resolvable:$true] %s1475
      %1478 = dma.vmem_to_hbm [thread:$0]  %s1476, 64, %s7, [#allocation5]
    $region57: #{tpu_custom_call.1} parent=1 // pred_fallthru
      _
    // Predicated region
    $region58: #{tpu_custom_call.1} parent=1 // pred_check
      _
    $region59: #{tpu_custom_call.1} parent=1 // pred_check_branch
      %1480 = sbr.rel (0) target = $region61
    $region60: #{tpu_custom_call.1} parent=1 // pred_region
      %1481 = dma.done [#allocation5], 64
    $region61: #{tpu_custom_call.1} parent=1 // pred_fallthru
      _
    %1482 = vsyncpa [#allocation4], 1
    %1483 = vsyncpa [#allocation7], 1
    %1484 = vsyncpa [#allocation10], 1
    %1485 = vsyncpa [#allocation13], 1
    %1486 = vsyncpa [#allocation5], 1

</llo_original>
